<compile_context>
chip_gen: v5e
topology: v5e:2x2
jax: 0.10.0
libtpu: 0.0.40
codegen_flags: <defaults>
</compile_context>

<pallas_src>
import functools

import jax
import jax.numpy as jnp
from jax.experimental import pallas as pl
from jax.experimental.pallas import tpu as pltpu

LAYER1 = 800
LAYER2 = 400
BN_EPS = 1e-5
_NSPLIT = 2          # leading "parallel" grid axis for the stats stages (dual-TC on v7x)
_SUBLANES = 8        # each split's partial stats live (replicated) in an 8-sublane block


def _round_up(x, m):
    return (x + m - 1) // m * m


@functools.lru_cache(maxsize=None)
def _vmem_budget_bytes():
    """Per-kernel scoped-VMEM budget derived from the chip's physical VMEM."""
    cap = 0
    try:
        info = pltpu.get_tpu_info()
        cap = int(getattr(info, "vmem_capacity_bytes", 0) or 0)
    except Exception:
        cap = 0
    if cap <= 0:
        cap = 64 << 20                       # conservative fallback = smallest per-core VMEM (v7x)
    return int(min(cap * 3 // 4, 100 << 20))  # ~48 MiB on v7x, ~96 MiB on v5e/v6e


@functools.lru_cache(maxsize=None)
def _max_fused_batch(in_dim, out_pad, budget):
    """Largest batch for which the whole network stays resident in VMEM (fused path)."""
    weight_bytes = 2 * (in_dim * LAYER1 + LAYER1 * LAYER2 + LAYER2 * out_pad)
    per_row = (2 * in_dim          # x (bf16)
               + 6 * LAYER1        # h1 f32 + a1 bf16
               + 6 * LAYER2        # h2 f32 + a2 bf16
               + 4 * out_pad)      # padded f32 output
    avail = budget - weight_bytes - (4 << 20)
    limit = (avail * 2) // (5 * per_row)     # 2.5x headroom for compiler temporaries
    return int(max(128, min(8192, (limit // 8) * 8)))


def _bn_scale_shift(bsum, bsq, gamma, beta, inv_n):
    """Training-mode BN: per-feature scale/shift from batch sum and sum-of-squares.

    Note: E[x^2]-E[x]^2 form; fine at these scales but less robust than Welford for huge means.
    """
    mu = bsum * inv_n
    var = bsq * inv_n - mu * mu              # biased batch variance
    scale = gamma * jax.lax.rsqrt(var + BN_EPS)
    shift = beta - mu * scale
    return scale, shift


def _split_stats_total(ref):
    """Sum the per-split partial stats (each split replicated across an 8-sublane block)."""
    tot = ref[0:1, :]
    for i in range(1, _NSPLIT):
        tot = tot + ref[_SUBLANES * i:_SUBLANES * i + 1, :]
    return tot


# ---------------------------------------------------------------------------
# Path 1: small/medium batch — single fused kernel, whole problem resident in VMEM.
# ---------------------------------------------------------------------------
def _fused_kernel(x_ref, w1_ref, g1_ref, be1_ref, w2_ref, g2_ref, be2_ref,
                  w3_ref, b3_ref, o_ref, *, inv_n):
    # Layer 1: Linear (no bias: cancelled by BN) -> BN -> ReLU
    h1 = jnp.dot(x_ref[...], w1_ref[...], preferred_element_type=jnp.float32)
    s1 = jnp.sum(h1, axis=0, keepdims=True)
    q1 = jnp.sum(h1 * h1, axis=0, keepdims=True)
    scale, shift = _bn_scale_shift(s1, q1, g1_ref[...], be1_ref[...], inv_n)
    a1 = jnp.maximum(h1 * scale + shift, 0.0)

    # Layer 2: Linear (no bias) -> BN -> ReLU
    h2 = jnp.dot(a1.astype(jnp.bfloat16), w2_ref[...], preferred_element_type=jnp.float32)
    s2 = jnp.sum(h2, axis=0, keepdims=True)
    q2 = jnp.sum(h2 * h2, axis=0, keepdims=True)
    scale, shift = _bn_scale_shift(s2, q2, g2_ref[...], be2_ref[...], inv_n)
    a2 = jnp.maximum(h2 * scale + shift, 0.0)

    # Layer 3: Linear with bias (lane-dense padded output)
    out = jnp.dot(a2.astype(jnp.bfloat16), w3_ref[...], preferred_element_type=jnp.float32)
    o_ref[...] = (out + b3_ref[...]).astype(o_ref.dtype)


@functools.partial(jax.jit, static_argnames=("out_dim", "out_pad", "vmem_limit"))
def _forward_fused(x, params, out_dim, out_pad, vmem_limit):
    batch, in_dim = x.shape
    w1, _b1, g1, be1, w2, _b2, g2, be2, w3, b3 = params
    x_bf = x.astype(jnp.bfloat16)
    w1_bf = w1.astype(jnp.bfloat16)
    w2_bf = w2.astype(jnp.bfloat16)
    w3_bf = jnp.pad(w3, ((0, 0), (0, out_pad - out_dim))).astype(jnp.bfloat16)
    b3_p = jnp.pad(b3, ((0, 0), (0, out_pad - out_dim)))

    vmem = pl.BlockSpec(memory_space=pltpu.MemorySpace.VMEM)
    flops = 2 * batch * (in_dim * LAYER1 + LAYER1 * LAYER2 + LAYER2 * out_pad)
    bytes_accessed = (x_bf.size * 2
                      + (w1_bf.size + w2_bf.size + w3_bf.size) * 2
                      + (g1.size + be1.size + g2.size + be2.size + b3_p.size) * 4
                      + batch * out_pad * 4)
    out = pl.pallas_call(
        functools.partial(_fused_kernel, inv_n=1.0 / batch),
        out_shape=jax.ShapeDtypeStruct((batch, out_pad), jnp.float32),
        in_specs=[vmem] * 9,
        out_specs=vmem,
        compiler_params=pltpu.CompilerParams(vmem_limit_bytes=vmem_limit),
        cost_estimate=pl.CostEstimate(flops=flops,
                                      transcendentals=LAYER1 + LAYER2,
                                      bytes_accessed=bytes_accessed),
    )(x_bf, w1_bf, g1, be1, w2_bf, g2, be2, w3_bf, b3_p)
    return out[:, :out_dim]


# ---------------------------------------------------------------------------
# Path 2: very large batch — batch-tiled grid, cross-tile BN statistics.
#   Stage 1: (s1, q1) of h1 = x@W1                (h1 never stored to HBM)
#   Stage 2: recompute h1, BN1+ReLU, h2 (bf16) + (s2, q2)
#   Stage 3: BN2+ReLU, out = a2@W3 + b3           (lane-dense padded output)
# ---------------------------------------------------------------------------
def _stage1_stats_kernel(x_ref, w_ref, s_ref, q_ref):
    @pl.when(pl.program_id(1) == 0)
    def _():
        s_ref[...] = jnp.zeros_like(s_ref)
        q_ref[...] = jnp.zeros_like(q_ref)

    h = jnp.dot(x_ref[...], w_ref[...], preferred_element_type=jnp.float32)
    # Zero-padded batch rows give h == 0 exactly (no bias), so they add nothing to the stats.
    s_ref[...] += jnp.sum(h, axis=0, keepdims=True)
    q_ref[...] += jnp.sum(h * h, axis=0, keepdims=True)


def _stage2_kernel(x_ref, w1_ref, s1_ref, q1_ref, g1_ref, be1_ref, w2_ref,
                   h2_ref, s2_ref, q2_ref, *,
                   inv_n, nt_per, tile_b, real_batch, need_mask):
    @pl.when(pl.program_id(1) == 0)
    def _():
        s2_ref[...] = jnp.zeros_like(s2_ref)
        q2_ref[...] = jnp.zeros_like(q2_ref)

    s1 = _split_stats_total(s1_ref)
    q1 = _split_stats_total(q1_ref)
    scale, shift = _bn_scale_shift(s1, q1, g1_ref[...], be1_ref[...], inv_n)

    # Recompute h1 = x @ W1 (K = in_dim is tiny) instead of round-tripping it through HBM.
    h1 = jnp.dot(x_ref[...], w1_ref[...], preferred_element_type=jnp.float32)
    a1 = jnp.maximum(h1 * scale + shift, 0.0)
    if need_mask:
        base = (pl.program_id(0) * nt_per + pl.program_id(1)) * tile_b
        rows = base + jax.lax.broadcasted_iota(jnp.int32, (tile_b, 1), 0)
        a1 = jnp.where(rows < real_batch, a1, 0.0)   # padded rows contribute 0 to h2 stats

    h2 = jnp.dot(a1.astype(jnp.bfloat16), w2_ref[...], preferred_element_type=jnp.float32)
    h2_bf = h2.astype(jnp.bfloat16)
    h2_ref[...] = h2_bf
    h2_r = h2_bf.astype(jnp.float32)                 # stats match what stage 3 reads back
    s2_ref[...] += jnp.sum(h2_r, axis=0, keepdims=True)
    q2_ref[...] += jnp.sum(h2_r * h2_r, axis=0, keepdims=True)


def _stage3_kernel(h2_ref, s2_ref, q2_ref, g2_ref, be2_ref, w3_ref, b3_ref, o_ref, *, inv_n):
    s2 = _split_stats_total(s2_ref)
    q2 = _split_stats_total(q2_ref)
    scale, shift = _bn_scale_shift(s2, q2, g2_ref[...], be2_ref[...], inv_n)
    a2 = jnp.maximum(h2_ref[...].astype(jnp.float32) * scale + shift, 0.0)
    out = jnp.dot(a2.astype(jnp.bfloat16), w3_ref[...], preferred_element_type=jnp.float32)
    o_ref[...] = (out + b3_ref[...]).astype(o_ref.dtype)


def _pick_batch_tile(batch):
    # Aim for >= 4 pipeline steps; multiple of 8 sublanes; cap at 256 rows.
    return int(max(8, min(256, _round_up(-(-batch // 4), 8))))


@functools.partial(jax.jit, static_argnames=("out_dim", "out_pad", "vmem_limit"))
def _forward_tiled(x, params, out_dim, out_pad, vmem_limit):
    batch, in_dim = x.shape
    w1, _b1, g1, be1, w2, _b2, g2, be2, w3, b3 = params

    tb = _pick_batch_tile(batch)
    nt = _round_up(pl.cdiv(batch, tb), _NSPLIT)
    nt_per = nt // _NSPLIT
    batch_pad = nt * tb
    need_mask = batch_pad != batch
    inv_n = 1.0 / batch
    stat_rows = _NSPLIT * _SUBLANES

    x_bf = x.astype(jnp.bfloat16)
    if need_mask:
        x_bf = jnp.pad(x_bf, ((0, batch_pad - batch), (0, 0)))
    w1_bf = w1.astype(jnp.bfloat16)
    w2_bf = w2.astype(jnp.bfloat16)
    w3_bf = jnp.pad(w3, ((0, 0), (0, out_pad - out_dim))).astype(jnp.bfloat16)
    b3_p = jnp.pad(b3, ((0, 0), (0, out_pad - out_dim)))

    def tile2(feat):            # batch-tiled spec on the (split, tile) grid
        return pl.BlockSpec((tb, feat), lambda c, t: (c * nt_per + t, 0))

    def const2(shape):          # resident across the whole (split, tile) grid
        return pl.BlockSpec(shape, lambda c, t: tuple(0 for _ in shape))

    def stat_out(feat):         # per-split partial-stat accumulator (one 8-row block per split)
        return pl.BlockSpec((_SUBLANES, feat), lambda c, t: (c, 0))

    cp12 = pltpu.CompilerParams(dimension_semantics=("parallel", "arbitrary"),
                                vmem_limit_bytes=vmem_limit)
    cp3 = pltpu.CompilerParams(dimension_semantics=("parallel",),
                               vmem_limit_bytes=vmem_limit)

    # ---- Stage 1: BN1 batch statistics only. ----
    s1, q1 = pl.pallas_call(
        _stage1_stats_kernel,
        grid=(_NSPLIT, nt_per),
        out_shape=(jax.ShapeDtypeStruct((stat_rows, LAYER1), jnp.float32),
                   jax.ShapeDtypeStruct((stat_rows, LAYER1), jnp.float32)),
        in_specs=[tile2(in_dim), const2((in_dim, LAYER1))],
        out_specs=(stat_out(LAYER1), stat_out(LAYER1)),
        compiler_params=cp12,
        cost_estimate=pl.CostEstimate(
            flops=2 * batch_pad * in_dim * LAYER1, transcendentals=0,
            bytes_accessed=x_bf.size * 2 + w1_bf.size * 2 + 2 * stat_rows * LAYER1 * 4),
    )(x_bf, w1_bf)

    # ---- Stage 2: recompute h1, BN1+ReLU, h2 = a1 @ W2 (stored bf16), BN2 statistics. ----
    h2, s2, q2 = pl.pallas_call(
        functools.partial(_stage2_kernel, inv_n=inv_n, nt_per=nt_per, tile_b=tb,
                          real_batch=batch, need_mask=need_mask),
        grid=(_NSPLIT, nt_per),
        out_shape=(jax.ShapeDtypeStruct((batch_pad, LAYER2), jnp.bfloat16),
                   jax.ShapeDtypeStruct((stat_rows, LAYER2), jnp.float32),
                   jax.ShapeDtypeStruct((stat_rows, LAYER2), jnp.float32)),
        in_specs=[tile2(in_dim),
                  const2((in_dim, LAYER1)),
                  const2((stat_rows, LAYER1)), const2((stat_rows, LAYER1)),
                  const2((1, LAYER1)), const2((1, LAYER1)),
                  const2((LAYER1, LAYER2))],
        out_specs=(tile2(LAYER2), stat_out(LAYER2), stat_out(LAYER2)),
        compiler_params=cp12,
        cost_estimate=pl.CostEstimate(
            flops=2 * batch_pad * (in_dim * LAYER1 + LAYER1 * LAYER2),
            transcendentals=LAYER1,
            bytes_accessed=(x_bf.size * 2 + w1_bf.size * 2 + w2_bf.size * 2
                            + batch_pad * LAYER2 * 2 + 4 * stat_rows * LAYER1)),
    )(x_bf, w1_bf, s1, q1, g1, be1, w2_bf)

    # ---- Stage 3: BN2+ReLU, out = a2 @ W3 + b3 (lane-dense padded output). ----
    def tile3(feat):
        return pl.BlockSpec((tb, feat), lambda t: (t, 0))

    def const3(shape):
        return pl.BlockSpec(shape, lambda t: tuple(0 for _ in shape))

    out = pl.pallas_call(
        functools.partial(_stage3_kernel, inv_n=inv_n),
        grid=(nt,),
        out_shape=jax.ShapeDtypeStruct((batch_pad, out_pad), jnp.float32),
        in_specs=[tile3(LAYER2),
                  const3((stat_rows, LAYER2)), const3((stat_rows, LAYER2)),
                  const3((1, LAYER2)), const3((1, LAYER2)),
                  const3((LAYER2, out_pad)), const3((1, out_pad))],
        out_specs=tile3(out_pad),
        compiler_params=cp3,
        cost_estimate=pl.CostEstimate(
            flops=2 * batch_pad * LAYER2 * out_pad, transcendentals=LAYER2,
            bytes_accessed=(batch_pad * LAYER2 * 2 + w3_bf.size * 2
                            + batch_pad * out_pad * 4)),
    )(h2, s2, q2, g2, be2, w3_bf, b3_p)

    return out[:batch, :out_dim]


# ---------------------------------------------------------------------------
# Public forward
# ---------------------------------------------------------------------------
def large_network_forward(x, params, *, out_dim, max_fused_batch=None):
    """Forward pass of LargeNetwork (training-mode BatchNorm, as in a fresh PyTorch module).

    TODO(synk): training-mode BN with batch == 1 gives var~0 (PyTorch raises in that case).
    """
    batch, in_dim = x.shape
    out_pad = _round_up(max(out_dim, 1), 128)     # lane-dense output, sliced back afterwards
    budget = _vmem_budget_bytes()
    if max_fused_batch is None:
        max_fused_batch = _max_fused_batch(in_dim, out_pad, budget)
    if batch <= max_fused_batch:
        return _forward_fused(x, params, out_dim, out_pad, budget)
    return _forward_tiled(x, params, out_dim, out_pad, budget)


# ---------------------------------------------------------------------------
# Parameter init (PyTorch Linear defaults) and references
# ---------------------------------------------------------------------------
def init_params(key, in_dim, out_dim):
    def linear(key, fan_in, fan_out):
        kw, kb = jax.random.split(key)
        bound = 1.0 / jnp.sqrt(jnp.float32(fan_in))
        w = jax.random.uniform(kw, (fan_in, fan_out), jnp.float32, -bound, bound)
        b = jax.random.uniform(kb, (1, fan_out), jnp.float32, -bound, bound)
        return w, b

    k1, k2, k3 = jax.random.split(key, 3)
    w1, b1 = linear(k1, in_dim, LAYER1)
    w2, b2 = linear(k2, LAYER1, LAYER2)
    w3, b3 = linear(k3, LAYER2, out_dim)
    g1 = jnp.ones((1, LAYER1), jnp.float32)
    be1 = jnp.zeros((1, LAYER1), jnp.float32)
    g2 = jnp.ones((1, LAYER2), jnp.float32)
    be2 = jnp.zeros((1, LAYER2), jnp.float32)
    return (w1, b1, g1, be1, w2, b2, g2, be2, w3, b3)


def reference_forward_f32(x, params):
    """Full-f32 reference matching the PyTorch module (train-mode BN, with b1/b2)."""
    w1, b1, g1, be1, w2, b2, g2, be2, w3, b3 = params

    def bn_relu(h, g, be):
        mu = jnp.mean(h, axis=0, keepdims=True)
        var = jnp.mean((h - mu) ** 2, axis=0, keepdims=True)
        return jnp.maximum((h - mu) / jnp.sqrt(var + BN_EPS) * g + be, 0.0)

    h = bn_relu(x @ w1 + b1, g1, be1)
    h = bn_relu(h @ w2 + b2, g2, be2)
    return h @ w3 + b3


def reference_forward_bf16(x, params, round_h2=False):
    """Reference emulating the kernel numerics (bf16 matmuls, fused-stat BN, no b1/b2).

    round_h2=True mirrors the tiled path, which stores h2 in bf16.
    """
    w1, _b1, g1, be1, w2, _b2, g2, be2, w3, b3 = params
    inv_n = 1.0 / x.shape[0]
    bf = jnp.bfloat16

    def bn_relu(h, g, be):
        s = jnp.sum(h, axis=0, keepdims=True)
        q = jnp.sum(h * h, axis=0, keepdims=True)
        scale, shift = _bn_scale_shift(s, q, g, be, inv_n)
        return jnp.maximum(h * scale + shift, 0.0)

    h1 = jnp.dot(x.astype(bf), w1.astype(bf), preferred_element_type=jnp.float32)
    a1 = bn_relu(h1, g1, be1)
    h2 = jnp.dot(a1.astype(bf), w2.astype(bf), preferred_element_type=jnp.float32)
    if round_h2:
        h2 = h2.astype(bf).astype(jnp.float32)
    a2 = bn_relu(h2, g2, be2)
    return jnp.dot(a2.astype(bf), w3.astype(bf), preferred_element_type=jnp.float32) + b3


def _check(out, x, params, name, round_h2, tight):
    ref_bf = reference_forward_bf16(x, params, round_h2=round_h2)
    ref_f32 = reference_forward_f32(x, params)
    assert out.shape == ref_f32.shape, f"{name}: bad output shape {out.shape}"
    # Tight check vs. a reference with matching (bf16-matmul) numerics.
    assert jnp.allclose(out, ref_bf, atol=tight, rtol=tight), f"{name}: mismatch vs bf16 reference"
    # Loose sanity check vs. the full-f32 module semantics (bf16 MXU rounding only).
    assert jnp.allclose(out, ref_f32, atol=2.5e-1, rtol=2.5e-1), f"{name}: mismatch vs f32 reference"


if __name__ == "__main__":
    in_dim, out_dim = 16, 4
    key = jax.random.PRNGKey(0)
    kx1, kx2, kp = jax.random.split(key, 3)
    params = init_params(kp, in_dim, out_dim)

    # Small batch -> fused single-kernel path (whole network resident in VMEM).
    x_small = jax.random.normal(kx1, (8, in_dim), jnp.float32)
    out_small = jax.block_until_ready(large_network_forward(x_small, params, out_dim=out_dim))
    _check(out_small, x_small, params, "fused", round_h2=False, tight=5e-3)

    # Larger, non-multiple-of-8 batch, forced onto the batch-tiled path (exercises padding/
    # masking, cross-tile BN stats, bf16 h2 intermediate and lane-dense padded output).
    x_large = jax.random.normal(kx2, (1000, in_dim), jnp.float32)
    out_large = jax.block_until_ready(
        large_network_forward(x_large, params, out_dim=out_dim, max_fused_batch=256))
    _check(out_large, x_large, params, "tiled", round_h2=True, tight=1e-2)

    print("KERNEL_OK")
</pallas_src>

<mosaic_0001>
module attributes {stable_mosaic.version = 11 : i64} {
  func.func @_fused_kernel(%arg0: memref<8x16xbf16, #tpu.memory_space<vmem>>, %arg1: memref<16x800xbf16, #tpu.memory_space<vmem>>, %arg2: memref<1x800xf32, #tpu.memory_space<vmem>>, %arg3: memref<1x800xf32, #tpu.memory_space<vmem>>, %arg4: memref<800x400xbf16, #tpu.memory_space<vmem>>, %arg5: memref<1x400xf32, #tpu.memory_space<vmem>>, %arg6: memref<1x400xf32, #tpu.memory_space<vmem>>, %arg7: memref<400x128xbf16, #tpu.memory_space<vmem>>, %arg8: memref<1x128xf32, #tpu.memory_space<vmem>>, %arg9: memref<8x128xf32, #tpu.memory_space<vmem>>) attributes {dimension_semantics = [], scalar_prefetch = 0 : i64, scratch_operands = 0 : i64, tpu.core_type = #tpu.core_type<tc>} {
    %c0 = arith.constant 0 : index
    %c0_0 = arith.constant 0 : index
    %0 = vector.load %arg0[%c0, %c0_0] : memref<8x16xbf16, #tpu.memory_space<vmem>>, vector<8x16xbf16>
    %c0_1 = arith.constant 0 : index
    %c0_2 = arith.constant 0 : index
    %1 = vector.load %arg1[%c0_1, %c0_2] : memref<16x800xbf16, #tpu.memory_space<vmem>>, vector<16x800xbf16>
    %cst = arith.constant dense<0.000000e+00> : vector<8x800xf32>
    %2 = tpu.matmul %0, %1, %cst {dimension_numbers = #tpu.dot_dimension_numbers<[1], [0], [0], [1], [0, 0, 1, 1], [], []>} : vector<8x16xbf16>, vector<16x800xbf16>, vector<8x800xf32> -> vector<8x800xf32>
    %cst_3 = arith.constant dense<0.000000e+00> : vector<800xf32>
    %3 = vector.multi_reduction <add>, %2, %cst_3 [0] : vector<8x800xf32> to vector<800xf32>
    %4 = vector.shape_cast %3 : vector<800xf32> to vector<1x800xf32>
    %5 = arith.mulf %2, %2 : vector<8x800xf32>
    %cst_4 = arith.constant dense<0.000000e+00> : vector<800xf32>
    %6 = vector.multi_reduction <add>, %5, %cst_4 [0] : vector<8x800xf32> to vector<800xf32>
    %7 = vector.shape_cast %6 : vector<800xf32> to vector<1x800xf32>
    %c0_5 = arith.constant 0 : index
    %c0_6 = arith.constant 0 : index
    %8 = vector.load %arg2[%c0_5, %c0_6] : memref<1x800xf32, #tpu.memory_space<vmem>>, vector<1x800xf32>
    %c0_7 = arith.constant 0 : index
    %c0_8 = arith.constant 0 : index
    %9 = vector.load %arg3[%c0_7, %c0_8] : memref<1x800xf32, #tpu.memory_space<vmem>>, vector<1x800xf32>
    %cst_9 = arith.constant 1.250000e-01 : f32
    %10 = vector.broadcast %cst_9 : f32 to vector<1x800xf32>
    %11 = arith.mulf %4, %10 : vector<1x800xf32>
    %cst_10 = arith.constant 1.250000e-01 : f32
    %12 = vector.broadcast %cst_10 : f32 to vector<1x800xf32>
    %13 = arith.mulf %7, %12 : vector<1x800xf32>
    %14 = arith.mulf %11, %11 : vector<1x800xf32>
    %15 = arith.subf %13, %14 : vector<1x800xf32>
    %cst_11 = arith.constant 9.99999974E-6 : f32
    %16 = vector.broadcast %cst_11 : f32 to vector<1x800xf32>
    %17 = arith.addf %15, %16 : vector<1x800xf32>
    %18 = math.rsqrt %17 : vector<1x800xf32>
    %19 = arith.mulf %8, %18 : vector<1x800xf32>
    %20 = arith.mulf %11, %19 : vector<1x800xf32>
    %21 = arith.subf %9, %20 : vector<1x800xf32>
    %22 = vector.broadcast %19 : vector<1x800xf32> to vector<8x800xf32>
    %23 = arith.mulf %2, %22 : vector<8x800xf32>
    %24 = vector.broadcast %21 : vector<1x800xf32> to vector<8x800xf32>
    %25 = arith.addf %23, %24 : vector<8x800xf32>
    %cst_12 = arith.constant 0.000000e+00 : f32
    %26 = vector.broadcast %cst_12 : f32 to vector<8x800xf32>
    %27 = arith.maximumf %25, %26 : vector<8x800xf32>
    %28 = arith.truncf %27 : vector<8x800xf32> to vector<8x800xbf16>
    %c0_13 = arith.constant 0 : index
    %c0_14 = arith.constant 0 : index
    %29 = vector.load %arg4[%c0_13, %c0_14] : memref<800x400xbf16, #tpu.memory_space<vmem>>, vector<800x400xbf16>
    %cst_15 = arith.constant dense<0.000000e+00> : vector<8x400xf32>
    %30 = tpu.matmul %28, %29, %cst_15 {dimension_numbers = #tpu.dot_dimension_numbers<[1], [0], [0], [1], [0, 0, 1, 1], [], []>} : vector<8x800xbf16>, vector<800x400xbf16>, vector<8x400xf32> -> vector<8x400xf32>
    %cst_16 = arith.constant dense<0.000000e+00> : vector<400xf32>
    %31 = vector.multi_reduction <add>, %30, %cst_16 [0] : vector<8x400xf32> to vector<400xf32>
    %32 = vector.shape_cast %31 : vector<400xf32> to vector<1x400xf32>
    %33 = arith.mulf %30, %30 : vector<8x400xf32>
    %cst_17 = arith.constant dense<0.000000e+00> : vector<400xf32>
    %34 = vector.multi_reduction <add>, %33, %cst_17 [0] : vector<8x400xf32> to vector<400xf32>
    %35 = vector.shape_cast %34 : vector<400xf32> to vector<1x400xf32>
    %c0_18 = arith.constant 0 : index
    %c0_19 = arith.constant 0 : index
    %36 = vector.load %arg5[%c0_18, %c0_19] : memref<1x400xf32, #tpu.memory_space<vmem>>, vector<1x400xf32>
    %c0_20 = arith.constant 0 : index
    %c0_21 = arith.constant 0 : index
    %37 = vector.load %arg6[%c0_20, %c0_21] : memref<1x400xf32, #tpu.memory_space<vmem>>, vector<1x400xf32>
    %cst_22 = arith.constant 1.250000e-01 : f32
    %38 = vector.broadcast %cst_22 : f32 to vector<1x400xf32>
    %39 = arith.mulf %32, %38 : vector<1x400xf32>
    %cst_23 = arith.constant 1.250000e-01 : f32
    %40 = vector.broadcast %cst_23 : f32 to vector<1x400xf32>
    %41 = arith.mulf %35, %40 : vector<1x400xf32>
    %42 = arith.mulf %39, %39 : vector<1x400xf32>
    %43 = arith.subf %41, %42 : vector<1x400xf32>
    %cst_24 = arith.constant 9.99999974E-6 : f32
    %44 = vector.broadcast %cst_24 : f32 to vector<1x400xf32>
    %45 = arith.addf %43, %44 : vector<1x400xf32>
    %46 = math.rsqrt %45 : vector<1x400xf32>
    %47 = arith.mulf %36, %46 : vector<1x400xf32>
    %48 = arith.mulf %39, %47 : vector<1x400xf32>
    %49 = arith.subf %37, %48 : vector<1x400xf32>
    %50 = vector.broadcast %47 : vector<1x400xf32> to vector<8x400xf32>
    %51 = arith.mulf %30, %50 : vector<8x400xf32>
    %52 = vector.broadcast %49 : vector<1x400xf32> to vector<8x400xf32>
    %53 = arith.addf %51, %52 : vector<8x400xf32>
    %cst_25 = arith.constant 0.000000e+00 : f32
    %54 = vector.broadcast %cst_25 : f32 to vector<8x400xf32>
    %55 = arith.maximumf %53, %54 : vector<8x400xf32>
    %56 = arith.truncf %55 : vector<8x400xf32> to vector<8x400xbf16>
    %c0_26 = arith.constant 0 : index
    %c0_27 = arith.constant 0 : index
    %57 = vector.load %arg7[%c0_26, %c0_27] : memref<400x128xbf16, #tpu.memory_space<vmem>>, vector<400x128xbf16>
    %cst_28 = arith.constant dense<0.000000e+00> : vector<8x128xf32>
    %58 = tpu.matmul %56, %57, %cst_28 {dimension_numbers = #tpu.dot_dimension_numbers<[1], [0], [0], [1], [0, 0, 1, 1], [], []>} : vector<8x400xbf16>, vector<400x128xbf16>, vector<8x128xf32> -> vector<8x128xf32>
    %c0_29 = arith.constant 0 : index
    %c0_30 = arith.constant 0 : index
    %59 = vector.load %arg8[%c0_29, %c0_30] : memref<1x128xf32, #tpu.memory_space<vmem>>, vector<1x128xf32>
    %60 = vector.broadcast %59 : vector<1x128xf32> to vector<8x128xf32>
    %61 = arith.addf %58, %60 : vector<8x128xf32>
    %c0_31 = arith.constant 0 : index
    %c0_32 = arith.constant 0 : index
    %62 = vector.load %arg9[%c0_31, %c0_32] : memref<8x128xf32, #tpu.memory_space<vmem>>, vector<8x128xf32>
    tpu.vector_store %arg9[%c0_31, %c0_32], %61 {strides = array<i32>} : memref<8x128xf32, #tpu.memory_space<vmem>>, vector<8x128xf32>,
    return
  }
}

</mosaic_0001>

<llo_original>
// kernel: _forward_fused.1
$region0: #{_forward_fused.1}
  #allocation0 [shape = 'u32[]', space=smem, size = 0x4, offset = 0x4, fixed_abs, tag = 'smem constant byte address 0x4 - core index']
  #allocation1 [shape = 'u32[72,128]{1,0:T(1,128)}', space=vmem, size = 0x9000, scoped, tag = 'internal scratch']
  %s0 = inlined_call_operand.vmem [shape: bf16[8,16], index: 0, kind: input, shape index: {}]
  %s1 = inlined_call_operand.vmem [shape: bf16[16,800], index: 1, kind: input, shape index: {}]
  %s2 = inlined_call_operand.vmem [shape: f32[1,800], index: 2, kind: input, shape index: {}]
  %s3 = inlined_call_operand.vmem [shape: f32[1,800], index: 3, kind: input, shape index: {}]
  %s4 = inlined_call_operand.vmem [shape: bf16[800,400], index: 4, kind: input, shape index: {}]
  %s5 = inlined_call_operand.vmem [shape: f32[1,400], index: 5, kind: input, shape index: {}]
  %s6 = inlined_call_operand.vmem [shape: f32[1,400], index: 6, kind: input, shape index: {}]
  %s7 = inlined_call_operand.vmem [shape: bf16[400,128], index: 7, kind: input, shape index: {}]
  %s8 = inlined_call_operand.vmem [shape: f32[1,128], index: 8, kind: input, shape index: {}]
  %s9 = inlined_call_operand.vmem [shape: f32[8,128], index: 9, kind: output, shape index: {}]
  %s10 = sld [smem:[#allocation0]]
  $region46: #{_forward_fused.1} parent=0
    _
  %s12 = ssub.s32 1, %s10
  %s13 = scalar_select 0, %s12, %s10
  // Predicated region
  $region2: #{_forward_fused.1} parent=0 // pred_check
    _
  $region3: #{_forward_fused.1} parent=0 // pred_check_branch
    %15 = sbr.rel (0) target = $region5
  $region4: #{_forward_fused.1} parent=0 // pred_region
    _
  $region5: #{_forward_fused.1} parent=0 // pred_fallthru
    _
  // Predicated region
  $region6: #{_forward_fused.1} parent=0 // pred_check
    _
  $region7: #{_forward_fused.1} parent=0 // pred_check_branch
    %17 = sbr.rel (0) target = $region9
  $region8: #{_forward_fused.1} parent=0 // pred_region
    _
  $region9: #{_forward_fused.1} parent=0 // pred_fallthru
    _
  // Predicated region
  $region10: #{_forward_fused.1} parent=0 // pred_check
    _
  $region11: #{_forward_fused.1} parent=0 // pred_check_branch
    %19 = sbr.rel (0) target = $region13
  $region12: #{_forward_fused.1} parent=0 // pred_region
    _
  $region13: #{_forward_fused.1} parent=0 // pred_fallthru
    _
  // Predicated region
  $region14: #{_forward_fused.1} parent=0 // pred_check
    _
  $region15: #{_forward_fused.1} parent=0 // pred_check_branch
    %21 = sbr.rel (0) target = $region17
  $region16: #{_forward_fused.1} parent=0 // pred_region
    _
  $region17: #{_forward_fused.1} parent=0 // pred_fallthru
    _
  // Predicated region
  $region18: #{_forward_fused.1} parent=0 // pred_check
    _
  $region19: #{_forward_fused.1} parent=0 // pred_check_branch
    %23 = sbr.rel (0) target = $region21
  $region20: #{_forward_fused.1} parent=0 // pred_region
    _
  $region21: #{_forward_fused.1} parent=0 // pred_fallthru
    _
  // Predicated region
  $region22: #{_forward_fused.1} parent=0 // pred_check
    _
  $region23: #{_forward_fused.1} parent=0 // pred_check_branch
    %25 = sbr.rel (0) target = $region25
  $region24: #{_forward_fused.1} parent=0 // pred_region
    _
  $region25: #{_forward_fused.1} parent=0 // pred_fallthru
    _
  // Predicated region
  $region26: #{_forward_fused.1} parent=0 // pred_check
    _
  $region27: #{_forward_fused.1} parent=0 // pred_check_branch
    %27 = sbr.rel (0) target = $region29
  $region28: #{_forward_fused.1} parent=0 // pred_region
    _
  $region29: #{_forward_fused.1} parent=0 // pred_fallthru
    _
  // Predicated region
  $region30: #{_forward_fused.1} parent=0 // pred_check
    _
  $region31: #{_forward_fused.1} parent=0 // pred_check_branch
    %29 = sbr.rel (0) target = $region33
  $region32: #{_forward_fused.1} parent=0 // pred_region
    _
  $region33: #{_forward_fused.1} parent=0 // pred_fallthru
    _
  // Predicated region
  $region34: #{_forward_fused.1} parent=0 // pred_check
    _
  $region35: #{_forward_fused.1} parent=0 // pred_check_branch
    %31 = sbr.rel (0) target = $region37
  $region36: #{_forward_fused.1} parent=0 // pred_region
    _
  $region37: #{_forward_fused.1} parent=0 // pred_fallthru
    _
  %v33 = vld [vmem:[%s0] sm:$0xf]
  %v34 = vld [vmem:[%s1] sm:$0xff]
  %v35 = vld [vmem:[%s1 + $0x8] sm:$0xff]
  %v36 = vld [vmem:[%s1 + $0x10] sm:$0xff]
  %v37 = vld [vmem:[%s1 + $0x18] sm:$0xf]
  %v38 = vld [vmem:[%s1 + $0x1c] sm:$0xff]
  %v39 = vld [vmem:[%s1 + $0x24] sm:$0xff]
  %v40 = vld [vmem:[%s1 + $0x2c] sm:$0xff]
  %v41 = vld [vmem:[%s1 + $0x34] sm:$0xf]
  %v50 = vunpack.c.l.b16 %v34
  %v51 = vunpack.c.h.b16 %v34
  %v52 = vunpack.c.l.b16 %v35
  %v53 = vunpack.c.h.b16 %v35
  %v54 = vunpack.c.l.b16 %v36
  %v55 = vunpack.c.h.b16 %v36
  %v56 = vunpack.c.l.b16 %v37
  %v57 = vunpack.c.l.b16 %v38
  %v58 = vunpack.c.h.b16 %v38
  %v59 = vunpack.c.l.b16 %v39
  %v60 = vunpack.c.h.b16 %v39
  %v61 = vunpack.c.l.b16 %v40
  %v62 = vunpack.c.h.b16 %v40
  %v63 = vunpack.c.l.b16 %v41
  %v64 = vpack.c.b16 %v57, %v50
  %v65 = vpack.c.b16 %v58, %v51
  %v66 = vpack.c.b16 %v59, %v52
  %v67 = vpack.c.b16 %v60, %v53
  %v68 = vpack.c.b16 %v61, %v54
  %v69 = vpack.c.b16 %v62, %v55
  %v70 = vpack.c.b16 %v63, %v56
  %vm78 = vcmask 130048
  %v80 = vsel %vm78, %v33, 0
  %82 = vmatpush.bf16.msra.mxu0 0
  %83 = vmatpush.bf16.msra.mxu0 0
  %84 = vmatpush.bf16.msra.mxu0 0
  %85 = vmatpush.bf16.msra.mxu0 0
  %86 = vmatpush.bf16.msra.mxu0 0
  %87 = vmatpush.bf16.msra.mxu0 0
  %88 = vmatpush.bf16.msra.mxu0 0
  %89 = vmatpush.bf16.msra.mxu0 %v64
  %90 = vmatmul.bf16.gmra.mxu0 %v80
  %v91 = vpop.f32.mrf.mxu0
  %v92 = vadd.f32 0.0, %v91
  %v93 = vpop.f32.mrf.mxu0
  %94 = vdwg.mxu0
  %95 = vmatpush.bf16.msra.mxu0 0
  %96 = vmatpush.bf16.msra.mxu0 0
  %97 = vmatpush.bf16.msra.mxu0 0
  %98 = vmatpush.bf16.msra.mxu0 0
  %99 = vmatpush.bf16.msra.mxu0 0
  %100 = vmatpush.bf16.msra.mxu0 0
  %101 = vmatpush.bf16.msra.mxu0 0
  %102 = vmatpush.bf16.msra.mxu0 %v65
  %103 = vmatmul.bf16.gmra.mxu0 %v80
  %v104 = vpop.f32.mrf.mxu0
  %v105 = vadd.f32 0.0, %v104
  %v106 = vpop.f32.mrf.mxu0
  %107 = vdwg.mxu0
  %108 = vmatpush.bf16.msra.mxu0 0
  %109 = vmatpush.bf16.msra.mxu0 0
  %110 = vmatpush.bf16.msra.mxu0 0
  %111 = vmatpush.bf16.msra.mxu0 0
  %112 = vmatpush.bf16.msra.mxu0 0
  %113 = vmatpush.bf16.msra.mxu0 0
  %114 = vmatpush.bf16.msra.mxu0 0
  %115 = vmatpush.bf16.msra.mxu0 %v66
  %116 = vmatmul.bf16.gmra.mxu0 %v80
  %v117 = vpop.f32.mrf.mxu0
  %v118 = vadd.f32 0.0, %v117
  %v119 = vpop.f32.mrf.mxu0
  %120 = vdwg.mxu0
  %121 = vmatpush.bf16.msra.mxu0 0
  %122 = vmatpush.bf16.msra.mxu0 0
  %123 = vmatpush.bf16.msra.mxu0 0
  %124 = vmatpush.bf16.msra.mxu0 0
  %125 = vmatpush.bf16.msra.mxu0 0
  %126 = vmatpush.bf16.msra.mxu0 0
  %127 = vmatpush.bf16.msra.mxu0 0
  %128 = vmatpush.bf16.msra.mxu0 %v67
  %129 = vmatmul.bf16.gmra.mxu0 %v80
  %v130 = vpop.f32.mrf.mxu0
  %v131 = vadd.f32 0.0, %v130
  %v132 = vpop.f32.mrf.mxu0
  %133 = vdwg.mxu0
  %134 = vmatpush.bf16.msra.mxu0 0
  %135 = vmatpush.bf16.msra.mxu0 0
  %136 = vmatpush.bf16.msra.mxu0 0
  %137 = vmatpush.bf16.msra.mxu0 0
  %138 = vmatpush.bf16.msra.mxu0 0
  %139 = vmatpush.bf16.msra.mxu0 0
  %140 = vmatpush.bf16.msra.mxu0 0
  %141 = vmatpush.bf16.msra.mxu0 %v68
  %142 = vmatmul.bf16.gmra.mxu0 %v80
  %v143 = vpop.f32.mrf.mxu0
  %v144 = vadd.f32 0.0, %v143
  %v145 = vpop.f32.mrf.mxu0
  %146 = vdwg.mxu0
  %147 = vmatpush.bf16.msra.mxu0 0
  %148 = vmatpush.bf16.msra.mxu0 0
  %149 = vmatpush.bf16.msra.mxu0 0
  %150 = vmatpush.bf16.msra.mxu0 0
  %151 = vmatpush.bf16.msra.mxu0 0
  %152 = vmatpush.bf16.msra.mxu0 0
  %153 = vmatpush.bf16.msra.mxu0 0
  %154 = vmatpush.bf16.msra.mxu0 %v69
  %155 = vmatmul.bf16.gmra.mxu0 %v80
  %v156 = vpop.f32.mrf.mxu0
  %v157 = vadd.f32 0.0, %v156
  %v158 = vpop.f32.mrf.mxu0
  %159 = vdwg.mxu0
  %160 = vmatpush.bf16.msra.mxu0 0
  %161 = vmatpush.bf16.msra.mxu0 0
  %162 = vmatpush.bf16.msra.mxu0 0
  %163 = vmatpush.bf16.msra.mxu0 0
  %164 = vmatpush.bf16.msra.mxu0 0
  %165 = vmatpush.bf16.msra.mxu0 0
  %166 = vmatpush.bf16.msra.mxu0 0
  %167 = vmatpush.bf16.msra.mxu0 %v70
  %168 = vmatmul.bf16.gmra.mxu0 %v80
  %v169 = vpop.f32.mrf.mxu0
  %v170 = vadd.f32 0.0, %v169
  %v171 = vpop.f32.mrf.mxu0
  %172 = vdwg.mxu0
  %v173 = vrot.slane %v92, 4
  %v174 = vadd.f32 %v92, %v173
  %v175 = vrot.slane %v174, 2
  %v176 = vadd.f32 %v174, %v175
  %v177 = vrot.slane %v176, 1
  %v178 = vadd.f32 %v176, %v177
  %v179 = vrot.slane %v105, 4
  %v180 = vadd.f32 %v105, %v179
  %v181 = vrot.slane %v180, 2
  %v182 = vadd.f32 %v180, %v181
  %v183 = vrot.slane %v182, 1
  %v184 = vadd.f32 %v182, %v183
  %v185 = vrot.slane %v118, 4
  %v186 = vadd.f32 %v118, %v185
  %v187 = vrot.slane %v186, 2
  %v188 = vadd.f32 %v186, %v187
  %v189 = vrot.slane %v188, 1
  %v190 = vadd.f32 %v188, %v189
  %v191 = vrot.slane %v131, 4
  %v192 = vadd.f32 %v131, %v191
  %v193 = vrot.slane %v192, 2
  %v194 = vadd.f32 %v192, %v193
  %v195 = vrot.slane %v194, 1
  %v196 = vadd.f32 %v194, %v195
  %v197 = vrot.slane %v144, 4
  %v198 = vadd.f32 %v144, %v197
  %v199 = vrot.slane %v198, 2
  %v200 = vadd.f32 %v198, %v199
  %v201 = vrot.slane %v200, 1
  %v202 = vadd.f32 %v200, %v201
  %v203 = vrot.slane %v157, 4
  %v204 = vadd.f32 %v157, %v203
  %v205 = vrot.slane %v204, 2
  %v206 = vadd.f32 %v204, %v205
  %v207 = vrot.slane %v206, 1
  %v208 = vadd.f32 %v206, %v207
  %vm209 = vcmask 261120
  %v210 = vsel %vm209, %v170, 0.0
  %v211 = vrot.slane %v210, 4
  %v212 = vadd.f32 %v210, %v211
  %v213 = vrot.slane %v212, 2
  %v214 = vadd.f32 %v212, %v213
  %v215 = vrot.slane %v214, 1
  %v216 = vadd.f32 %v214, %v215
  %v217 = vmul.f32 %v92, %v92
  %v218 = vmul.f32 %v105, %v105
  %v219 = vmul.f32 %v118, %v118
  %v220 = vmul.f32 %v131, %v131
  %v221 = vmul.f32 %v144, %v144
  %v222 = vmul.f32 %v157, %v157
  %v223 = vmul.f32 %v170, %v170
  %v224 = vrot.slane %v217, 4
  %v225 = vadd.f32 %v217, %v224
  %v226 = vrot.slane %v225, 2
  %v227 = vadd.f32 %v225, %v226
  %v228 = vrot.slane %v227, 1
  %v229 = vadd.f32 %v227, %v228
  %v230 = vrot.slane %v218, 4
  %v231 = vadd.f32 %v218, %v230
  %v232 = vrot.slane %v231, 2
  %v233 = vadd.f32 %v231, %v232
  %v234 = vrot.slane %v233, 1
  %v235 = vadd.f32 %v233, %v234
  %v236 = vrot.slane %v219, 4
  %v237 = vadd.f32 %v219, %v236
  %v238 = vrot.slane %v237, 2
  %v239 = vadd.f32 %v237, %v238
  %v240 = vrot.slane %v239, 1
  %v241 = vadd.f32 %v239, %v240
  %v242 = vrot.slane %v220, 4
  %v243 = vadd.f32 %v220, %v242
  %v244 = vrot.slane %v243, 2
  %v245 = vadd.f32 %v243, %v244
  %v246 = vrot.slane %v245, 1
  %v247 = vadd.f32 %v245, %v246
  %v248 = vrot.slane %v221, 4
  %v249 = vadd.f32 %v221, %v248
  %v250 = vrot.slane %v249, 2
  %v251 = vadd.f32 %v249, %v250
  %v252 = vrot.slane %v251, 1
  %v253 = vadd.f32 %v251, %v252
  %v254 = vrot.slane %v222, 4
  %v255 = vadd.f32 %v222, %v254
  %v256 = vrot.slane %v255, 2
  %v257 = vadd.f32 %v255, %v256
  %v258 = vrot.slane %v257, 1
  %v259 = vadd.f32 %v257, %v258
  %v260 = vsel %vm209, %v223, 0.0
  %v261 = vrot.slane %v260, 4
  %v262 = vadd.f32 %v260, %v261
  %v263 = vrot.slane %v262, 2
  %v264 = vadd.f32 %v262, %v263
  %v265 = vrot.slane %v264, 1
  %v266 = vadd.f32 %v264, %v265
  %v267 = vld [vmem:[%s2] sm:$0x7f]
  %v268 = vld [vmem:[%s3] sm:$0x7f]
  %v269 = vmul.f32 %v178, 0.125
  %v270 = vmul.f32 %v184, 0.125
  %v271 = vmul.f32 %v190, 0.125
  %v272 = vmul.f32 %v196, 0.125
  %v273 = vmul.f32 %v202, 0.125
  %v274 = vmul.f32 %v208, 0.125
  %v275 = vmul.f32 %v216, 0.125
  %v276 = vmul.f32 %v229, 0.125
  %v277 = vmul.f32 %v235, 0.125
  %v278 = vmul.f32 %v241, 0.125
  %v279 = vmul.f32 %v247, 0.125
  %v280 = vmul.f32 %v253, 0.125
  %v281 = vmul.f32 %v259, 0.125
  %v282 = vmul.f32 %v266, 0.125
  %v283 = vmul.f32 %v269, %v269
  %v284 = vmul.f32 %v270, %v270
  %v285 = vmul.f32 %v271, %v271
  %v286 = vmul.f32 %v272, %v272
  %v287 = vmul.f32 %v273, %v273
  %v288 = vmul.f32 %v274, %v274
  %v289 = vmul.f32 %v275, %v275
  %v290 = vsub.f32 %v276, %v283
  %v291 = vsub.f32 %v277, %v284
  %v292 = vsub.f32 %v278, %v285
  %v293 = vsub.f32 %v279, %v286
  %v294 = vsub.f32 %v280, %v287
  %v295 = vsub.f32 %v281, %v288
  %v296 = vsub.f32 %v282, %v289
  %v297 = vadd.f32 %v290, 1e-05
  %v298 = vadd.f32 %v291, 1e-05
  %v299 = vadd.f32 %v292, 1e-05
  %v300 = vadd.f32 %v293, 1e-05
  %v301 = vadd.f32 %v294, 1e-05
  %v302 = vadd.f32 %v295, 1e-05
  %v303 = vadd.f32 %v296, 1e-05
  %v304 = vrsqrt.pop %v297
  %v305 = vmul.f32 %v304, %v297
  %v306 = vmul.f32 %v305, %v304
  %v307 = vmul.f32 0.5, %v306
  %v308 = vsub.f32 1.5, %v307
  %v309 = vmul.f32 %v304, %v308
  %vm310 = vweird.f32 %v297
  %vm311 = vweird.f32 %v304
  %vm312 = vmor %vm310, %vm311
  %v313 = vsel %vm312, %v304, %v309
  %v314 = vrsqrt.pop %v298
  %v315 = vmul.f32 %v314, %v298
  %v316 = vmul.f32 %v315, %v314
  %v317 = vmul.f32 0.5, %v316
  %v318 = vsub.f32 1.5, %v317
  %v319 = vmul.f32 %v314, %v318
  %vm320 = vweird.f32 %v298
  %vm321 = vweird.f32 %v314
  %vm322 = vmor %vm320, %vm321
  %v323 = vsel %vm322, %v314, %v319
  %v324 = vrsqrt.pop %v299
  %v325 = vmul.f32 %v324, %v299
  %v326 = vmul.f32 %v325, %v324
  %v327 = vmul.f32 0.5, %v326
  %v328 = vsub.f32 1.5, %v327
  %v329 = vmul.f32 %v324, %v328
  %vm330 = vweird.f32 %v299
  %vm331 = vweird.f32 %v324
  %vm332 = vmor %vm330, %vm331
  %v333 = vsel %vm332, %v324, %v329
  %v334 = vrsqrt.pop %v300
  %v335 = vmul.f32 %v334, %v300
  %v336 = vmul.f32 %v335, %v334
  %v337 = vmul.f32 0.5, %v336
  %v338 = vsub.f32 1.5, %v337
  %v339 = vmul.f32 %v334, %v338
  %vm340 = vweird.f32 %v300
  %vm341 = vweird.f32 %v334
  %vm342 = vmor %vm340, %vm341
  %v343 = vsel %vm342, %v334, %v339
  %v344 = vrsqrt.pop %v301
  %v345 = vmul.f32 %v344, %v301
  %v346 = vmul.f32 %v345, %v344
  %v347 = vmul.f32 0.5, %v346
  %v348 = vsub.f32 1.5, %v347
  %v349 = vmul.f32 %v344, %v348
  %vm350 = vweird.f32 %v301
  %vm351 = vweird.f32 %v344
  %vm352 = vmor %vm350, %vm351
  %v353 = vsel %vm352, %v344, %v349
  %v354 = vrsqrt.pop %v302
  %v355 = vmul.f32 %v354, %v302
  %v356 = vmul.f32 %v355, %v354
  %v357 = vmul.f32 0.5, %v356
  %v358 = vsub.f32 1.5, %v357
  %v359 = vmul.f32 %v354, %v358
  %vm360 = vweird.f32 %v302
  %vm361 = vweird.f32 %v354
  %vm362 = vmor %vm360, %vm361
  %v363 = vsel %vm362, %v354, %v359
  %v364 = vrsqrt.pop %v303
  %v365 = vmul.f32 %v364, %v303
  %v366 = vmul.f32 %v365, %v364
  %v367 = vmul.f32 0.5, %v366
  %v368 = vsub.f32 1.5, %v367
  %v369 = vmul.f32 %v364, %v368
  %vm370 = vweird.f32 %v303
  %vm371 = vweird.f32 %v364
  %vm372 = vmor %vm370, %vm371
  %v373 = vsel %vm372, %v364, %v369
  %v381 = vrot.slane %v323, 7
  %v382 = vrot.slane %v333, 6
  %v383 = vrot.slane %v343, 5
  %v384 = vrot.slane %v353, 4
  %v385 = vrot.slane %v363, 3
  %v386 = vrot.slane %v373, 2
  %vm387 = vcmask 1040384
  %v388 = vsel %vm387, %v313, %v381
  %vm389 = vcmask 1042434
  %v390 = vsel %vm389, %v382, %v383
  %vm391 = vcmask 1041408
  %v392 = vsel %vm391, %v388, %v390
  %vm393 = vcmask 1044484
  %v394 = vsel %vm393, %v384, %v385
  %vm395 = vcmask 1045508
  %v396 = vsel %vm395, %v394, %v386
  %vm397 = vcmask 1043456
  %v398 = vsel %vm397, %v392, %v396
  %v400 = vmul.f32 %v267, %v398
  %v402 = vperm.slane %v400, 0
  %v403 = vperm.slane %v400, 1
  %v404 = vperm.slane %v400, 2
  %v405 = vperm.slane %v400, 3
  %v406 = vperm.slane %v400, 4
  %v407 = vperm.slane %v400, 5
  %v408 = vperm.slane %v400, 6
  %v416 = vmul.f32 %v269, %v402
  %v417 = vmul.f32 %v270, %v403
  %v418 = vmul.f32 %v271, %v404
  %v419 = vmul.f32 %v272, %v405
  %v420 = vmul.f32 %v273, %v406
  %v421 = vmul.f32 %v274, %v407
  %v422 = vmul.f32 %v275, %v408
  %v430 = vrot.slane %v417, 7
  %v431 = vrot.slane %v418, 6
  %v432 = vrot.slane %v419, 5
  %v433 = vrot.slane %v420, 4
  %v434 = vrot.slane %v421, 3
  %v435 = vrot.slane %v422, 2
  %v436 = vsel %vm387, %v416, %v430
  %v437 = vsel %vm389, %v431, %v432
  %v438 = vsel %vm391, %v436, %v437
  %v439 = vsel %vm393, %v433, %v434
  %v440 = vsel %vm395, %v439, %v435
  %v441 = vsel %vm397, %v438, %v440
  %v443 = vsub.f32 %v268, %v441
  %v444 = vmul.f32 %v92, %v402
  %v445 = vmul.f32 %v105, %v403
  %v446 = vmul.f32 %v118, %v404
  %v447 = vmul.f32 %v131, %v405
  %v448 = vmul.f32 %v144, %v406
  %v449 = vmul.f32 %v157, %v407
  %v450 = vmul.f32 %v170, %v408
  %v452 = vperm.slane %v443, 0
  %v453 = vperm.slane %v443, 1
  %v454 = vperm.slane %v443, 2
  %v455 = vperm.slane %v443, 3
  %v456 = vperm.slane %v443, 4
  %v457 = vperm.slane %v443, 5
  %v458 = vperm.slane %v443, 6
  %v466 = vadd.f32 %v444, %v452
  %v467 = vadd.f32 %v445, %v453
  %v468 = vadd.f32 %v446, %v454
  %v469 = vadd.f32 %v447, %v455
  %v470 = vadd.f32 %v448, %v456
  %v471 = vadd.f32 %v449, %v457
  %v472 = vadd.f32 %v450, %v458
  %v473 = vmax.f32 %v466, 0.0
  %v474 = vmax.f32 %v467, 0.0
  %v475 = vmax.f32 %v468, 0.0
  %v476 = vmax.f32 %v469, 0.0
  %v477 = vmax.f32 %v470, 0.0
  %v478 = vmax.f32 %v471, 0.0
  %v479 = vmax.f32 %v472, 0.0
  %v480 = vpack.c.bf16 %v473, %v473
  %v481 = vpack.c.bf16 %v474, %v474
  %v482 = vpack.c.bf16 %v475, %v475
  %v483 = vpack.c.bf16 %v476, %v476
  %v484 = vpack.c.bf16 %v477, %v477
  %v485 = vpack.c.bf16 %v478, %v478
  %v486 = vpack.c.bf16 %v479, %v479
  %v487 = vld [vmem:[%s4] sm:$0xff]
  %v488 = vld [vmem:[%s4 + $0x8] sm:$0xff]
  %v489 = vld [vmem:[%s4 + $0x10] sm:$0xff]
  %v490 = vld [vmem:[%s4 + $0x18] sm:$0xff]
  %v491 = vld [vmem:[%s4 + $0x20] sm:$0xff]
  %v492 = vld [vmem:[%s4 + $0x28] sm:$0xff]
  %v493 = vld [vmem:[%s4 + $0x30] sm:$0xff]
  %v494 = vld [vmem:[%s4 + $0x38] sm:$0xff]
  %v495 = vld [vmem:[%s4 + $0x40] sm:$0xff]
  %v496 = vld [vmem:[%s4 + $0x48] sm:$0xff]
  %v497 = vld [vmem:[%s4 + $0x50] sm:$0xff]
  %v498 = vld [vmem:[%s4 + $0x58] sm:$0xff]
  %v499 = vld [vmem:[%s4 + $0x60] sm:$0xff]
  %v500 = vld [vmem:[%s4 + $0x68] sm:$0xff]
  %v501 = vld [vmem:[%s4 + $0x70] sm:$0xff]
  %v502 = vld [vmem:[%s4 + $0x78] sm:$0xff]
  %v503 = vld [vmem:[%s4 + $0x80] sm:$0xff]
  %v504 = vld [vmem:[%s4 + $0x88] sm:$0xff]
  %v505 = vld [vmem:[%s4 + $0x90] sm:$0xff]
  %v506 = vld [vmem:[%s4 + $0x98] sm:$0xff]
  %v507 = vld [vmem:[%s4 + $0xa0] sm:$0xff]
  %v508 = vld [vmem:[%s4 + $0xa8] sm:$0xff]
  %v509 = vld [vmem:[%s4 + $0xb0] sm:$0xff]
  %v510 = vld [vmem:[%s4 + $0xb8] sm:$0xff]
  %v511 = vld [vmem:[%s4 + $0xc0] sm:$0xff]
  %v512 = vld [vmem:[%s4 + $0xc8] sm:$0xff]
  %v513 = vld [vmem:[%s4 + $0xd0] sm:$0xff]
  %v514 = vld [vmem:[%s4 + $0xd8] sm:$0xff]
  %v515 = vld [vmem:[%s4 + $0xe0] sm:$0xff]
  %v516 = vld [vmem:[%s4 + $0xe8] sm:$0xff]
  %v517 = vld [vmem:[%s4 + $0xf0] sm:$0xff]
  %v518 = vld [vmem:[%s4 + $0xf8] sm:$0xff]
  %v519 = vld [vmem:[%s4 + $0x100] sm:$0xff]
  %v520 = vld [vmem:[%s4 + $0x108] sm:$0xff]
  %v521 = vld [vmem:[%s4 + $0x110] sm:$0xff]
  %v522 = vld [vmem:[%s4 + $0x118] sm:$0xff]
  %v523 = vld [vmem:[%s4 + $0x120] sm:$0xff]
  %v524 = vld [vmem:[%s4 + $0x128] sm:$0xff]
  %v525 = vld [vmem:[%s4 + $0x130] sm:$0xff]
  %v526 = vld [vmem:[%s4 + $0x138] sm:$0xff]
  %v527 = vld [vmem:[%s4 + $0x140] sm:$0xff]
  %v528 = vld [vmem:[%s4 + $0x148] sm:$0xff]
  %v529 = vld [vmem:[%s4 + $0x150] sm:$0xff]
  %v530 = vld [vmem:[%s4 + $0x158] sm:$0xff]
  %v531 = vld [vmem:[%s4 + $0x160] sm:$0xff]
  %v532 = vld [vmem:[%s4 + $0x168] sm:$0xff]
  %v533 = vld [vmem:[%s4 + $0x170] sm:$0xff]
  %v534 = vld [vmem:[%s4 + $0x178] sm:$0xff]
  %v535 = vld [vmem:[%s4 + $0x180] sm:$0xff]
  %v536 = vld [vmem:[%s4 + $0x188] sm:$0xff]
  %v537 = vld [vmem:[%s4 + $0x190] sm:$0xff]
  %v538 = vld [vmem:[%s4 + $0x198] sm:$0xff]
  %v539 = vld [vmem:[%s4 + $0x1a0] sm:$0xff]
  %v540 = vld [vmem:[%s4 + $0x1a8] sm:$0xff]
  %v541 = vld [vmem:[%s4 + $0x1b0] sm:$0xff]
  %v542 = vld [vmem:[%s4 + $0x1b8] sm:$0xff]
  %v543 = vld [vmem:[%s4 + $0x1c0] sm:$0xff]
  %v544 = vld [vmem:[%s4 + $0x1c8] sm:$0xff]
  %v545 = vld [vmem:[%s4 + $0x1d0] sm:$0xff]
  %v546 = vld [vmem:[%s4 + $0x1d8] sm:$0xff]
  %v547 = vld [vmem:[%s4 + $0x1e0] sm:$0xff]
  %v548 = vld [vmem:[%s4 + $0x1e8] sm:$0xff]
  %v549 = vld [vmem:[%s4 + $0x1f0] sm:$0xff]
  %v550 = vld [vmem:[%s4 + $0x1f8] sm:$0xff]
  %v551 = vld [vmem:[%s4 + $0x200] sm:$0xff]
  %v552 = vld [vmem:[%s4 + $0x208] sm:$0xff]
  %v553 = vld [vmem:[%s4 + $0x210] sm:$0xff]
  %v554 = vld [vmem:[%s4 + $0x218] sm:$0xff]
  %v555 = vld [vmem:[%s4 + $0x220] sm:$0xff]
  %v556 = vld [vmem:[%s4 + $0x228] sm:$0xff]
  %v557 = vld [vmem:[%s4 + $0x230] sm:$0xff]
  %v558 = vld [vmem:[%s4 + $0x238] sm:$0xff]
  %v559 = vld [vmem:[%s4 + $0x240] sm:$0xff]
  %v560 = vld [vmem:[%s4 + $0x248] sm:$0xff]
  %v561 = vld [vmem:[%s4 + $0x250] sm:$0xff]
  %v562 = vld [vmem:[%s4 + $0x258] sm:$0xff]
  %v563 = vld [vmem:[%s4 + $0x260] sm:$0xff]
  %v564 = vld [vmem:[%s4 + $0x268] sm:$0xff]
  %v565 = vld [vmem:[%s4 + $0x270] sm:$0xff]
  %v566 = vld [vmem:[%s4 + $0x278] sm:$0xff]
  %v567 = vld [vmem:[%s4 + $0x280] sm:$0xff]
  %v568 = vld [vmem:[%s4 + $0x288] sm:$0xff]
  %v569 = vld [vmem:[%s4 + $0x290] sm:$0xff]
  %v570 = vld [vmem:[%s4 + $0x298] sm:$0xff]
  %v571 = vld [vmem:[%s4 + $0x2a0] sm:$0xff]
  %v572 = vld [vmem:[%s4 + $0x2a8] sm:$0xff]
  %v573 = vld [vmem:[%s4 + $0x2b0] sm:$0xff]
  %v574 = vld [vmem:[%s4 + $0x2b8] sm:$0xff]
  %v575 = vld [vmem:[%s4 + $0x2c0] sm:$0xff]
  %v576 = vld [vmem:[%s4 + $0x2c8] sm:$0xff]
  %v577 = vld [vmem:[%s4 + $0x2d0] sm:$0xff]
  %v578 = vld [vmem:[%s4 + $0x2d8] sm:$0xff]
  %v579 = vld [vmem:[%s4 + $0x2e0] sm:$0xff]
  %v580 = vld [vmem:[%s4 + $0x2e8] sm:$0xff]
  %v581 = vld [vmem:[%s4 + $0x2f0] sm:$0xff]
  %v582 = vld [vmem:[%s4 + $0x2f8] sm:$0xff]
  %v583 = vld [vmem:[%s4 + $0x300] sm:$0xff]
  %v584 = vld [vmem:[%s4 + $0x308] sm:$0xff]
  %v585 = vld [vmem:[%s4 + $0x310] sm:$0xff]
  %v586 = vld [vmem:[%s4 + $0x318] sm:$0xff]
  %v587 = vld [vmem:[%s4 + $0x320] sm:$0xff]
  %v588 = vld [vmem:[%s4 + $0x328] sm:$0xff]
  %v589 = vld [vmem:[%s4 + $0x330] sm:$0xff]
  %v590 = vld [vmem:[%s4 + $0x338] sm:$0xff]
  %v591 = vld [vmem:[%s4 + $0x340] sm:$0xff]
  %v592 = vld [vmem:[%s4 + $0x348] sm:$0xff]
  %v593 = vld [vmem:[%s4 + $0x350] sm:$0xff]
  %v594 = vld [vmem:[%s4 + $0x358] sm:$0xff]
  %v595 = vld [vmem:[%s4 + $0x360] sm:$0xff]
  %v596 = vld [vmem:[%s4 + $0x368] sm:$0xff]
  %v597 = vld [vmem:[%s4 + $0x370] sm:$0xff]
  %v598 = vld [vmem:[%s4 + $0x378] sm:$0xff]
  %v599 = vld [vmem:[%s4 + $0x380] sm:$0xff]
  %v600 = vld [vmem:[%s4 + $0x388] sm:$0xff]
  %v601 = vld [vmem:[%s4 + $0x390] sm:$0xff]
  %v602 = vld [vmem:[%s4 + $0x398] sm:$0xff]
  %v603 = vld [vmem:[%s4 + $0x3a0] sm:$0xff]
  %v604 = vld [vmem:[%s4 + $0x3a8] sm:$0xff]
  %v605 = vld [vmem:[%s4 + $0x3b0] sm:$0xff]
  %v606 = vld [vmem:[%s4 + $0x3b8] sm:$0xff]
  %v607 = vld [vmem:[%s4 + $0x3c0] sm:$0xff]
  %v608 = vld [vmem:[%s4 + $0x3c8] sm:$0xff]
  %v609 = vld [vmem:[%s4 + $0x3d0] sm:$0xff]
  %v610 = vld [vmem:[%s4 + $0x3d8] sm:$0xff]
  %v611 = vld [vmem:[%s4 + $0x3e0] sm:$0xff]
  %v612 = vld [vmem:[%s4 + $0x3e8] sm:$0xff]
  %v613 = vld [vmem:[%s4 + $0x3f0] sm:$0xff]
  %v614 = vld [vmem:[%s4 + $0x3f8] sm:$0xff]
  %v615 = vld [vmem:[%s4 + $0x400] sm:$0xff]
  %v616 = vld [vmem:[%s4 + $0x408] sm:$0xff]
  %v617 = vld [vmem:[%s4 + $0x410] sm:$0xff]
  %v618 = vld [vmem:[%s4 + $0x418] sm:$0xff]
  %v619 = vld [vmem:[%s4 + $0x420] sm:$0xff]
  %v620 = vld [vmem:[%s4 + $0x428] sm:$0xff]
  %v621 = vld [vmem:[%s4 + $0x430] sm:$0xff]
  %v622 = vld [vmem:[%s4 + $0x438] sm:$0xff]
  %v623 = vld [vmem:[%s4 + $0x440] sm:$0xff]
  %v624 = vld [vmem:[%s4 + $0x448] sm:$0xff]
  %v625 = vld [vmem:[%s4 + $0x450] sm:$0xff]
  %v626 = vld [vmem:[%s4 + $0x458] sm:$0xff]
  %v627 = vld [vmem:[%s4 + $0x460] sm:$0xff]
  %v628 = vld [vmem:[%s4 + $0x468] sm:$0xff]
  %v629 = vld [vmem:[%s4 + $0x470] sm:$0xff]
  %v630 = vld [vmem:[%s4 + $0x478] sm:$0xff]
  %v631 = vld [vmem:[%s4 + $0x480] sm:$0xff]
  %v632 = vld [vmem:[%s4 + $0x488] sm:$0xff]
  %v633 = vld [vmem:[%s4 + $0x490] sm:$0xff]
  %v634 = vld [vmem:[%s4 + $0x498] sm:$0xff]
  %v635 = vld [vmem:[%s4 + $0x4a0] sm:$0xff]
  %v636 = vld [vmem:[%s4 + $0x4a8] sm:$0xff]
  %v637 = vld [vmem:[%s4 + $0x4b0] sm:$0xff]
  %v638 = vld [vmem:[%s4 + $0x4b8] sm:$0xff]
  %v639 = vld [vmem:[%s4 + $0x4c0] sm:$0xff]
  %v640 = vld [vmem:[%s4 + $0x4c8] sm:$0xff]
  %v641 = vld [vmem:[%s4 + $0x4d0] sm:$0xff]
  %v642 = vld [vmem:[%s4 + $0x4d8] sm:$0xff]
  %v643 = vld [vmem:[%s4 + $0x4e0] sm:$0xff]
  %v644 = vld [vmem:[%s4 + $0x4e8] sm:$0xff]
  %v645 = vld [vmem:[%s4 + $0x4f0] sm:$0xff]
  %v646 = vld [vmem:[%s4 + $0x4f8] sm:$0xff]
  %v647 = vld [vmem:[%s4 + $0x500] sm:$0xff]
  %v648 = vld [vmem:[%s4 + $0x508] sm:$0xff]
  %v649 = vld [vmem:[%s4 + $0x510] sm:$0xff]
  %v650 = vld [vmem:[%s4 + $0x518] sm:$0xff]
  %v651 = vld [vmem:[%s4 + $0x520] sm:$0xff]
  %v652 = vld [vmem:[%s4 + $0x528] sm:$0xff]
  %v653 = vld [vmem:[%s4 + $0x530] sm:$0xff]
  %v654 = vld [vmem:[%s4 + $0x538] sm:$0xff]
  %v655 = vld [vmem:[%s4 + $0x540] sm:$0xff]
  %v656 = vld [vmem:[%s4 + $0x548] sm:$0xff]
  %v657 = vld [vmem:[%s4 + $0x550] sm:$0xff]
  %v658 = vld [vmem:[%s4 + $0x558] sm:$0xff]
  %v659 = vld [vmem:[%s4 + $0x560] sm:$0xff]
  %v660 = vld [vmem:[%s4 + $0x568] sm:$0xff]
  %v661 = vld [vmem:[%s4 + $0x570] sm:$0xff]
  %v662 = vld [vmem:[%s4 + $0x578] sm:$0xff]
  %v663 = vld [vmem:[%s4 + $0x580] sm:$0xff]
  %v664 = vld [vmem:[%s4 + $0x588] sm:$0xff]
  %v665 = vld [vmem:[%s4 + $0x590] sm:$0xff]
  %v666 = vld [vmem:[%s4 + $0x598] sm:$0xff]
  %v667 = vld [vmem:[%s4 + $0x5a0] sm:$0xff]
  %v668 = vld [vmem:[%s4 + $0x5a8] sm:$0xff]
  %v669 = vld [vmem:[%s4 + $0x5b0] sm:$0xff]
  %v670 = vld [vmem:[%s4 + $0x5b8] sm:$0xff]
  %v671 = vld [vmem:[%s4 + $0x5c0] sm:$0xff]
  %v672 = vld [vmem:[%s4 + $0x5c8] sm:$0xff]
  %v673 = vld [vmem:[%s4 + $0x5d0] sm:$0xff]
  %v674 = vld [vmem:[%s4 + $0x5d8] sm:$0xff]
  %v675 = vld [vmem:[%s4 + $0x5e0] sm:$0xff]
  %v676 = vld [vmem:[%s4 + $0x5e8] sm:$0xff]
  %v677 = vld [vmem:[%s4 + $0x5f0] sm:$0xff]
  %v678 = vld [vmem:[%s4 + $0x5f8] sm:$0xff]
  %v679 = vld [vmem:[%s4 + $0x600] sm:$0xff]
  %v680 = vld [vmem:[%s4 + $0x608] sm:$0xff]
  %v681 = vld [vmem:[%s4 + $0x610] sm:$0xff]
  %v682 = vld [vmem:[%s4 + $0x618] sm:$0xff]
  %v683 = vld [vmem:[%s4 + $0x620] sm:$0xff]
  %v684 = vld [vmem:[%s4 + $0x628] sm:$0xff]
  %v685 = vld [vmem:[%s4 + $0x630] sm:$0xff]
  %v686 = vld [vmem:[%s4 + $0x638] sm:$0xff]
  %v887 = vunpack.c.l.b16 %v487
  %v888 = vunpack.c.h.b16 %v487
  %v889 = vunpack.c.l.b16 %v488
  %v890 = vunpack.c.h.b16 %v488
  %v891 = vunpack.c.l.b16 %v489
  %v892 = vunpack.c.h.b16 %v489
  %v893 = vunpack.c.l.b16 %v490
  %v894 = vunpack.c.h.b16 %v490
  %v895 = vunpack.c.l.b16 %v491
  %v896 = vunpack.c.h.b16 %v491
  %v897 = vunpack.c.l.b16 %v492
  %v898 = vunpack.c.h.b16 %v492
  %v899 = vunpack.c.l.b16 %v493
  %v900 = vunpack.c.h.b16 %v493
  %v901 = vunpack.c.l.b16 %v494
  %v902 = vunpack.c.h.b16 %v494
  %v903 = vunpack.c.l.b16 %v495
  %v904 = vunpack.c.h.b16 %v495
  %v905 = vunpack.c.l.b16 %v496
  %v906 = vunpack.c.h.b16 %v496
  %v907 = vunpack.c.l.b16 %v497
  %v908 = vunpack.c.h.b16 %v497
  %v909 = vunpack.c.l.b16 %v498
  %v910 = vunpack.c.h.b16 %v498
  %v911 = vunpack.c.l.b16 %v499
  %v912 = vunpack.c.h.b16 %v499
  %v913 = vunpack.c.l.b16 %v500
  %v914 = vunpack.c.h.b16 %v500
  %v915 = vunpack.c.l.b16 %v501
  %v916 = vunpack.c.h.b16 %v501
  %v917 = vunpack.c.l.b16 %v502
  %v918 = vunpack.c.h.b16 %v502
  %v919 = vunpack.c.l.b16 %v503
  %v920 = vunpack.c.h.b16 %v503
  %v921 = vunpack.c.l.b16 %v504
  %v922 = vunpack.c.h.b16 %v504
  %v923 = vunpack.c.l.b16 %v505
  %v924 = vunpack.c.h.b16 %v505
  %v925 = vunpack.c.l.b16 %v506
  %v926 = vunpack.c.h.b16 %v506
  %v927 = vunpack.c.l.b16 %v507
  %v928 = vunpack.c.h.b16 %v507
  %v929 = vunpack.c.l.b16 %v508
  %v930 = vunpack.c.h.b16 %v508
  %v931 = vunpack.c.l.b16 %v509
  %v932 = vunpack.c.h.b16 %v509
  %v933 = vunpack.c.l.b16 %v510
  %v934 = vunpack.c.h.b16 %v510
  %v935 = vunpack.c.l.b16 %v511
  %v936 = vunpack.c.h.b16 %v511
  %v937 = vunpack.c.l.b16 %v512
  %v938 = vunpack.c.h.b16 %v512
  %v939 = vunpack.c.l.b16 %v513
  %v940 = vunpack.c.h.b16 %v513
  %v941 = vunpack.c.l.b16 %v514
  %v942 = vunpack.c.h.b16 %v514
  %v943 = vunpack.c.l.b16 %v515
  %v944 = vunpack.c.h.b16 %v515
  %v945 = vunpack.c.l.b16 %v516
  %v946 = vunpack.c.h.b16 %v516
  %v947 = vunpack.c.l.b16 %v517
  %v948 = vunpack.c.h.b16 %v517
  %v949 = vunpack.c.l.b16 %v518
  %v950 = vunpack.c.h.b16 %v518
  %v951 = vunpack.c.l.b16 %v519
  %v952 = vunpack.c.h.b16 %v519
  %v953 = vunpack.c.l.b16 %v520
  %v954 = vunpack.c.h.b16 %v520
  %v955 = vunpack.c.l.b16 %v521
  %v956 = vunpack.c.h.b16 %v521
  %v957 = vunpack.c.l.b16 %v522
  %v958 = vunpack.c.h.b16 %v522
  %v959 = vunpack.c.l.b16 %v523
  %v960 = vunpack.c.h.b16 %v523
  %v961 = vunpack.c.l.b16 %v524
  %v962 = vunpack.c.h.b16 %v524
  %v963 = vunpack.c.l.b16 %v525
  %v964 = vunpack.c.h.b16 %v525
  %v965 = vunpack.c.l.b16 %v526
  %v966 = vunpack.c.h.b16 %v526
  %v967 = vunpack.c.l.b16 %v527
  %v968 = vunpack.c.h.b16 %v527
  %v969 = vunpack.c.l.b16 %v528
  %v970 = vunpack.c.h.b16 %v528
  %v971 = vunpack.c.l.b16 %v529
  %v972 = vunpack.c.h.b16 %v529
  %v973 = vunpack.c.l.b16 %v530
  %v974 = vunpack.c.h.b16 %v530
  %v975 = vunpack.c.l.b16 %v531
  %v976 = vunpack.c.h.b16 %v531
  %v977 = vunpack.c.l.b16 %v532
  %v978 = vunpack.c.h.b16 %v532
  %v979 = vunpack.c.l.b16 %v533
  %v980 = vunpack.c.h.b16 %v533
  %v981 = vunpack.c.l.b16 %v534
  %v982 = vunpack.c.h.b16 %v534
  %v983 = vunpack.c.l.b16 %v535
  %v984 = vunpack.c.h.b16 %v535
  %v985 = vunpack.c.l.b16 %v536
  %v986 = vunpack.c.h.b16 %v536
  %v987 = vunpack.c.l.b16 %v537
  %v988 = vunpack.c.h.b16 %v537
  %v989 = vunpack.c.l.b16 %v538
  %v990 = vunpack.c.h.b16 %v538
  %v991 = vunpack.c.l.b16 %v539
  %v992 = vunpack.c.h.b16 %v539
  %v993 = vunpack.c.l.b16 %v540
  %v994 = vunpack.c.h.b16 %v540
  %v995 = vunpack.c.l.b16 %v541
  %v996 = vunpack.c.h.b16 %v541
  %v997 = vunpack.c.l.b16 %v542
  %v998 = vunpack.c.h.b16 %v542
  %v999 = vunpack.c.l.b16 %v543
  %v1000 = vunpack.c.h.b16 %v543
  %v1001 = vunpack.c.l.b16 %v544
  %v1002 = vunpack.c.h.b16 %v544
  %v1003 = vunpack.c.l.b16 %v545
  %v1004 = vunpack.c.h.b16 %v545
  %v1005 = vunpack.c.l.b16 %v546
  %v1006 = vunpack.c.h.b16 %v546
  %v1007 = vunpack.c.l.b16 %v547
  %v1008 = vunpack.c.h.b16 %v547
  %v1009 = vunpack.c.l.b16 %v548
  %v1010 = vunpack.c.h.b16 %v548
  %v1011 = vunpack.c.l.b16 %v549
  %v1012 = vunpack.c.h.b16 %v549
  %v1013 = vunpack.c.l.b16 %v550
  %v1014 = vunpack.c.h.b16 %v550
  %v1015 = vunpack.c.l.b16 %v551
  %v1016 = vunpack.c.h.b16 %v551
  %v1017 = vunpack.c.l.b16 %v552
  %v1018 = vunpack.c.h.b16 %v552
  %v1019 = vunpack.c.l.b16 %v553
  %v1020 = vunpack.c.h.b16 %v553
  %v1021 = vunpack.c.l.b16 %v554
  %v1022 = vunpack.c.h.b16 %v554
  %v1023 = vunpack.c.l.b16 %v555
  %v1024 = vunpack.c.h.b16 %v555
  %v1025 = vunpack.c.l.b16 %v556
  %v1026 = vunpack.c.h.b16 %v556
  %v1027 = vunpack.c.l.b16 %v557
  %v1028 = vunpack.c.h.b16 %v557
  %v1029 = vunpack.c.l.b16 %v558
  %v1030 = vunpack.c.h.b16 %v558
  %v1031 = vunpack.c.l.b16 %v559
  %v1032 = vunpack.c.h.b16 %v559
  %v1033 = vunpack.c.l.b16 %v560
  %v1034 = vunpack.c.h.b16 %v560
  %v1035 = vunpack.c.l.b16 %v561
  %v1036 = vunpack.c.h.b16 %v561
  %v1037 = vunpack.c.l.b16 %v562
  %v1038 = vunpack.c.h.b16 %v562
  %v1039 = vunpack.c.l.b16 %v563
  %v1040 = vunpack.c.h.b16 %v563
  %v1041 = vunpack.c.l.b16 %v564
  %v1042 = vunpack.c.h.b16 %v564
  %v1043 = vunpack.c.l.b16 %v565
  %v1044 = vunpack.c.h.b16 %v565
  %v1045 = vunpack.c.l.b16 %v566
  %v1046 = vunpack.c.h.b16 %v566
  %v1047 = vunpack.c.l.b16 %v567
  %v1048 = vunpack.c.h.b16 %v567
  %v1049 = vunpack.c.l.b16 %v568
  %v1050 = vunpack.c.h.b16 %v568
  %v1051 = vunpack.c.l.b16 %v569
  %v1052 = vunpack.c.h.b16 %v569
  %v1053 = vunpack.c.l.b16 %v570
  %v1054 = vunpack.c.h.b16 %v570
  %v1055 = vunpack.c.l.b16 %v571
  %v1056 = vunpack.c.h.b16 %v571
  %v1057 = vunpack.c.l.b16 %v572
  %v1058 = vunpack.c.h.b16 %v572
  %v1059 = vunpack.c.l.b16 %v573
  %v1060 = vunpack.c.h.b16 %v573
  %v1061 = vunpack.c.l.b16 %v574
  %v1062 = vunpack.c.h.b16 %v574
  %v1063 = vunpack.c.l.b16 %v575
  %v1064 = vunpack.c.h.b16 %v575
  %v1065 = vunpack.c.l.b16 %v576
  %v1066 = vunpack.c.h.b16 %v576
  %v1067 = vunpack.c.l.b16 %v577
  %v1068 = vunpack.c.h.b16 %v577
  %v1069 = vunpack.c.l.b16 %v578
  %v1070 = vunpack.c.h.b16 %v578
  %v1071 = vunpack.c.l.b16 %v579
  %v1072 = vunpack.c.h.b16 %v579
  %v1073 = vunpack.c.l.b16 %v580
  %v1074 = vunpack.c.h.b16 %v580
  %v1075 = vunpack.c.l.b16 %v581
  %v1076 = vunpack.c.h.b16 %v581
  %v1077 = vunpack.c.l.b16 %v582
  %v1078 = vunpack.c.h.b16 %v582
  %v1079 = vunpack.c.l.b16 %v583
  %v1080 = vunpack.c.h.b16 %v583
  %v1081 = vunpack.c.l.b16 %v584
  %v1082 = vunpack.c.h.b16 %v584
  %v1083 = vunpack.c.l.b16 %v585
  %v1084 = vunpack.c.h.b16 %v585
  %v1085 = vunpack.c.l.b16 %v586
  %v1086 = vunpack.c.h.b16 %v586
  %v1087 = vunpack.c.l.b16 %v587
  %v1088 = vunpack.c.h.b16 %v587
  %v1089 = vunpack.c.l.b16 %v588
  %v1090 = vunpack.c.h.b16 %v588
  %v1091 = vunpack.c.l.b16 %v589
  %v1092 = vunpack.c.h.b16 %v589
  %v1093 = vunpack.c.l.b16 %v590
  %v1094 = vunpack.c.h.b16 %v590
  %v1095 = vunpack.c.l.b16 %v591
  %v1096 = vunpack.c.h.b16 %v591
  %v1097 = vunpack.c.l.b16 %v592
  %v1098 = vunpack.c.h.b16 %v592
  %v1099 = vunpack.c.l.b16 %v593
  %v1100 = vunpack.c.h.b16 %v593
  %v1101 = vunpack.c.l.b16 %v594
  %v1102 = vunpack.c.h.b16 %v594
  %v1103 = vunpack.c.l.b16 %v595
  %v1104 = vunpack.c.h.b16 %v595
  %v1105 = vunpack.c.l.b16 %v596
  %v1106 = vunpack.c.h.b16 %v596
  %v1107 = vunpack.c.l.b16 %v597
  %v1108 = vunpack.c.h.b16 %v597
  %v1109 = vunpack.c.l.b16 %v598
  %v1110 = vunpack.c.h.b16 %v598
  %v1111 = vunpack.c.l.b16 %v599
  %v1112 = vunpack.c.h.b16 %v599
  %v1113 = vunpack.c.l.b16 %v600
  %v1114 = vunpack.c.h.b16 %v600
  %v1115 = vunpack.c.l.b16 %v601
  %v1116 = vunpack.c.h.b16 %v601
  %v1117 = vunpack.c.l.b16 %v602
  %v1118 = vunpack.c.h.b16 %v602
  %v1119 = vunpack.c.l.b16 %v603
  %v1120 = vunpack.c.h.b16 %v603
  %v1121 = vunpack.c.l.b16 %v604
  %v1122 = vunpack.c.h.b16 %v604
  %v1123 = vunpack.c.l.b16 %v605
  %v1124 = vunpack.c.h.b16 %v605
  %v1125 = vunpack.c.l.b16 %v606
  %v1126 = vunpack.c.h.b16 %v606
  %v1127 = vunpack.c.l.b16 %v607
  %v1128 = vunpack.c.h.b16 %v607
  %v1129 = vunpack.c.l.b16 %v608
  %v1130 = vunpack.c.h.b16 %v608
  %v1131 = vunpack.c.l.b16 %v609
  %v1132 = vunpack.c.h.b16 %v609
  %v1133 = vunpack.c.l.b16 %v610
  %v1134 = vunpack.c.h.b16 %v610
  %v1135 = vunpack.c.l.b16 %v611
  %v1136 = vunpack.c.h.b16 %v611
  %v1137 = vunpack.c.l.b16 %v612
  %v1138 = vunpack.c.h.b16 %v612
  %v1139 = vunpack.c.l.b16 %v613
  %v1140 = vunpack.c.h.b16 %v613
  %v1141 = vunpack.c.l.b16 %v614
  %v1142 = vunpack.c.h.b16 %v614
  %v1143 = vunpack.c.l.b16 %v615
  %v1144 = vunpack.c.h.b16 %v615
  %v1145 = vunpack.c.l.b16 %v616
  %v1146 = vunpack.c.h.b16 %v616
  %v1147 = vunpack.c.l.b16 %v617
  %v1148 = vunpack.c.h.b16 %v617
  %v1149 = vunpack.c.l.b16 %v618
  %v1150 = vunpack.c.h.b16 %v618
  %v1151 = vunpack.c.l.b16 %v619
  %v1152 = vunpack.c.h.b16 %v619
  %v1153 = vunpack.c.l.b16 %v620
  %v1154 = vunpack.c.h.b16 %v620
  %v1155 = vunpack.c.l.b16 %v621
  %v1156 = vunpack.c.h.b16 %v621
  %v1157 = vunpack.c.l.b16 %v622
  %v1158 = vunpack.c.h.b16 %v622
  %v1159 = vunpack.c.l.b16 %v623
  %v1160 = vunpack.c.h.b16 %v623
  %v1161 = vunpack.c.l.b16 %v624
  %v1162 = vunpack.c.h.b16 %v624
  %v1163 = vunpack.c.l.b16 %v625
  %v1164 = vunpack.c.h.b16 %v625
  %v1165 = vunpack.c.l.b16 %v626
  %v1166 = vunpack.c.h.b16 %v626
  %v1167 = vunpack.c.l.b16 %v627
  %v1168 = vunpack.c.h.b16 %v627
  %v1169 = vunpack.c.l.b16 %v628
  %v1170 = vunpack.c.h.b16 %v628
  %v1171 = vunpack.c.l.b16 %v629
  %v1172 = vunpack.c.h.b16 %v629
  %v1173 = vunpack.c.l.b16 %v630
  %v1174 = vunpack.c.h.b16 %v630
  %v1175 = vunpack.c.l.b16 %v631
  %v1176 = vunpack.c.h.b16 %v631
  %v1177 = vunpack.c.l.b16 %v632
  %v1178 = vunpack.c.h.b16 %v632
  %v1179 = vunpack.c.l.b16 %v633
  %v1180 = vunpack.c.h.b16 %v633
  %v1181 = vunpack.c.l.b16 %v634
  %v1182 = vunpack.c.h.b16 %v634
  %v1183 = vunpack.c.l.b16 %v635
  %v1184 = vunpack.c.h.b16 %v635
  %v1185 = vunpack.c.l.b16 %v636
  %v1186 = vunpack.c.h.b16 %v636
  %v1187 = vunpack.c.l.b16 %v637
  %v1188 = vunpack.c.h.b16 %v637
  %v1189 = vunpack.c.l.b16 %v638
  %v1190 = vunpack.c.h.b16 %v638
  %v1191 = vunpack.c.l.b16 %v639
  %v1192 = vunpack.c.h.b16 %v639
  %v1193 = vunpack.c.l.b16 %v640
  %v1194 = vunpack.c.h.b16 %v640
  %v1195 = vunpack.c.l.b16 %v641
  %v1196 = vunpack.c.h.b16 %v641
  %v1197 = vunpack.c.l.b16 %v642
  %v1198 = vunpack.c.h.b16 %v642
  %v1199 = vunpack.c.l.b16 %v643
  %v1200 = vunpack.c.h.b16 %v643
  %v1201 = vunpack.c.l.b16 %v644
  %v1202 = vunpack.c.h.b16 %v644
  %v1203 = vunpack.c.l.b16 %v645
  %v1204 = vunpack.c.h.b16 %v645
  %v1205 = vunpack.c.l.b16 %v646
  %v1206 = vunpack.c.h.b16 %v646
  %v1207 = vunpack.c.l.b16 %v647
  %v1208 = vunpack.c.h.b16 %v647
  %v1209 = vunpack.c.l.b16 %v648
  %v1210 = vunpack.c.h.b16 %v648
  %v1211 = vunpack.c.l.b16 %v649
  %v1212 = vunpack.c.h.b16 %v649
  %v1213 = vunpack.c.l.b16 %v650
  %v1214 = vunpack.c.h.b16 %v650
  %v1215 = vunpack.c.l.b16 %v651
  %v1216 = vunpack.c.h.b16 %v651
  %v1217 = vunpack.c.l.b16 %v652
  %v1218 = vunpack.c.h.b16 %v652
  %v1219 = vunpack.c.l.b16 %v653
  %v1220 = vunpack.c.h.b16 %v653
  %v1221 = vunpack.c.l.b16 %v654
  %v1222 = vunpack.c.h.b16 %v654
  %v1223 = vunpack.c.l.b16 %v655
  %v1224 = vunpack.c.h.b16 %v655
  %v1225 = vunpack.c.l.b16 %v656
  %v1226 = vunpack.c.h.b16 %v656
  %v1227 = vunpack.c.l.b16 %v657
  %v1228 = vunpack.c.h.b16 %v657
  %v1229 = vunpack.c.l.b16 %v658
  %v1230 = vunpack.c.h.b16 %v658
  %v1231 = vunpack.c.l.b16 %v659
  %v1232 = vunpack.c.h.b16 %v659
  %v1233 = vunpack.c.l.b16 %v660
  %v1234 = vunpack.c.h.b16 %v660
  %v1235 = vunpack.c.l.b16 %v661
  %v1236 = vunpack.c.h.b16 %v661
  %v1237 = vunpack.c.l.b16 %v662
  %v1238 = vunpack.c.h.b16 %v662
  %v1239 = vunpack.c.l.b16 %v663
  %v1240 = vunpack.c.h.b16 %v663
  %v1241 = vunpack.c.l.b16 %v664
  %v1242 = vunpack.c.h.b16 %v664
  %v1243 = vunpack.c.l.b16 %v665
  %v1244 = vunpack.c.h.b16 %v665
  %v1245 = vunpack.c.l.b16 %v666
  %v1246 = vunpack.c.h.b16 %v666
  %v1247 = vunpack.c.l.b16 %v667
  %v1248 = vunpack.c.h.b16 %v667
  %v1249 = vunpack.c.l.b16 %v668
  %v1250 = vunpack.c.h.b16 %v668
  %v1251 = vunpack.c.l.b16 %v669
  %v1252 = vunpack.c.h.b16 %v669
  %v1253 = vunpack.c.l.b16 %v670
  %v1254 = vunpack.c.h.b16 %v670
  %v1255 = vunpack.c.l.b16 %v671
  %v1256 = vunpack.c.h.b16 %v671
  %v1257 = vunpack.c.l.b16 %v672
  %v1258 = vunpack.c.h.b16 %v672
  %v1259 = vunpack.c.l.b16 %v673
  %v1260 = vunpack.c.h.b16 %v673
  %v1261 = vunpack.c.l.b16 %v674
  %v1262 = vunpack.c.h.b16 %v674
  %v1263 = vunpack.c.l.b16 %v675
  %v1264 = vunpack.c.h.b16 %v675
  %v1265 = vunpack.c.l.b16 %v676
  %v1266 = vunpack.c.h.b16 %v676
  %v1267 = vunpack.c.l.b16 %v677
  %v1268 = vunpack.c.h.b16 %v677
  %v1269 = vunpack.c.l.b16 %v678
  %v1270 = vunpack.c.h.b16 %v678
  %v1271 = vunpack.c.l.b16 %v679
  %v1272 = vunpack.c.h.b16 %v679
  %v1273 = vunpack.c.l.b16 %v680
  %v1274 = vunpack.c.h.b16 %v680
  %v1275 = vunpack.c.l.b16 %v681
  %v1276 = vunpack.c.h.b16 %v681
  %v1277 = vunpack.c.l.b16 %v682
  %v1278 = vunpack.c.h.b16 %v682
  %v1279 = vunpack.c.l.b16 %v683
  %v1280 = vunpack.c.h.b16 %v683
  %v1281 = vunpack.c.l.b16 %v684
  %v1282 = vunpack.c.h.b16 %v684
  %v1283 = vunpack.c.l.b16 %v685
  %v1284 = vunpack.c.h.b16 %v685
  %v1285 = vunpack.c.l.b16 %v686
  %v1286 = vunpack.c.h.b16 %v686
  %v1287 = vpack.c.b16 %v891, %v887
  %v1288 = vpack.c.b16 %v892, %v888
  %v1289 = vpack.c.b16 %v893, %v889
  %v1290 = vpack.c.b16 %v894, %v890
  %v1291 = vpack.c.b16 %v899, %v895
  %v1292 = vpack.c.b16 %v900, %v896
  %v1293 = vpack.c.b16 %v901, %v897
  %v1294 = vpack.c.b16 %v902, %v898
  %v1295 = vpack.c.b16 %v907, %v903
  %v1296 = vpack.c.b16 %v908, %v904
  %v1297 = vpack.c.b16 %v909, %v905
  %v1298 = vpack.c.b16 %v910, %v906
  %v1299 = vpack.c.b16 %v915, %v911
  %v1300 = vpack.c.b16 %v916, %v912
  %v1301 = vpack.c.b16 %v917, %v913
  %v1302 = vpack.c.b16 %v918, %v914
  %v1303 = vpack.c.b16 %v923, %v919
  %v1304 = vpack.c.b16 %v924, %v920
  %v1305 = vpack.c.b16 %v925, %v921
  %v1306 = vpack.c.b16 %v926, %v922
  %v1307 = vpack.c.b16 %v931, %v927
  %v1308 = vpack.c.b16 %v932, %v928
  %v1309 = vpack.c.b16 %v933, %v929
  %v1310 = vpack.c.b16 %v934, %v930
  %v1311 = vpack.c.b16 %v939, %v935
  %v1312 = vpack.c.b16 %v940, %v936
  %v1313 = vpack.c.b16 %v941, %v937
  %v1314 = vpack.c.b16 %v942, %v938
  %v1315 = vpack.c.b16 %v947, %v943
  %v1316 = vpack.c.b16 %v948, %v944
  %v1317 = vpack.c.b16 %v949, %v945
  %v1318 = vpack.c.b16 %v950, %v946
  %v1319 = vpack.c.b16 %v955, %v951
  %v1320 = vpack.c.b16 %v956, %v952
  %v1321 = vpack.c.b16 %v957, %v953
  %v1322 = vpack.c.b16 %v958, %v954
  %v1323 = vpack.c.b16 %v963, %v959
  %v1324 = vpack.c.b16 %v964, %v960
  %v1325 = vpack.c.b16 %v965, %v961
  %v1326 = vpack.c.b16 %v966, %v962
  %v1327 = vpack.c.b16 %v971, %v967
  %v1328 = vpack.c.b16 %v972, %v968
  %v1329 = vpack.c.b16 %v973, %v969
  %v1330 = vpack.c.b16 %v974, %v970
  %v1331 = vpack.c.b16 %v979, %v975
  %v1332 = vpack.c.b16 %v980, %v976
  %v1333 = vpack.c.b16 %v981, %v977
  %v1334 = vpack.c.b16 %v982, %v978
  %v1335 = vpack.c.b16 %v987, %v983
  %v1336 = vpack.c.b16 %v988, %v984
  %v1337 = vpack.c.b16 %v989, %v985
  %v1338 = vpack.c.b16 %v990, %v986
  %v1339 = vpack.c.b16 %v995, %v991
  %v1340 = vpack.c.b16 %v996, %v992
  %v1341 = vpack.c.b16 %v997, %v993
  %v1342 = vpack.c.b16 %v998, %v994
  %v1343 = vpack.c.b16 %v1003, %v999
  %v1344 = vpack.c.b16 %v1004, %v1000
  %v1345 = vpack.c.b16 %v1005, %v1001
  %v1346 = vpack.c.b16 %v1006, %v1002
  %v1347 = vpack.c.b16 %v1011, %v1007
  %v1348 = vpack.c.b16 %v1012, %v1008
  %v1349 = vpack.c.b16 %v1013, %v1009
  %v1350 = vpack.c.b16 %v1014, %v1010
  %v1351 = vpack.c.b16 %v1019, %v1015
  %v1352 = vpack.c.b16 %v1020, %v1016
  %v1353 = vpack.c.b16 %v1021, %v1017
  %v1354 = vpack.c.b16 %v1022, %v1018
  %v1355 = vpack.c.b16 %v1027, %v1023
  %v1356 = vpack.c.b16 %v1028, %v1024
  %v1357 = vpack.c.b16 %v1029, %v1025
  %v1358 = vpack.c.b16 %v1030, %v1026
  %v1359 = vpack.c.b16 %v1035, %v1031
  %v1360 = vpack.c.b16 %v1036, %v1032
  %v1361 = vpack.c.b16 %v1037, %v1033
  %v1362 = vpack.c.b16 %v1038, %v1034
  %v1363 = vpack.c.b16 %v1043, %v1039
  %v1364 = vpack.c.b16 %v1044, %v1040
  %v1365 = vpack.c.b16 %v1045, %v1041
  %v1366 = vpack.c.b16 %v1046, %v1042
  %v1367 = vpack.c.b16 %v1051, %v1047
  %v1368 = vpack.c.b16 %v1052, %v1048
  %v1369 = vpack.c.b16 %v1053, %v1049
  %v1370 = vpack.c.b16 %v1054, %v1050
  %v1371 = vpack.c.b16 %v1059, %v1055
  %v1372 = vpack.c.b16 %v1060, %v1056
  %v1373 = vpack.c.b16 %v1061, %v1057
  %v1374 = vpack.c.b16 %v1062, %v1058
  %v1375 = vpack.c.b16 %v1067, %v1063
  %v1376 = vpack.c.b16 %v1068, %v1064
  %v1377 = vpack.c.b16 %v1069, %v1065
  %v1378 = vpack.c.b16 %v1070, %v1066
  %v1379 = vpack.c.b16 %v1075, %v1071
  %v1380 = vpack.c.b16 %v1076, %v1072
  %v1381 = vpack.c.b16 %v1077, %v1073
  %v1382 = vpack.c.b16 %v1078, %v1074
  %v1383 = vpack.c.b16 %v1083, %v1079
  %v1384 = vpack.c.b16 %v1084, %v1080
  %v1385 = vpack.c.b16 %v1085, %v1081
  %v1386 = vpack.c.b16 %v1086, %v1082
  %v1387 = vpack.c.b16 %v1091, %v1087
  %v1388 = vpack.c.b16 %v1092, %v1088
  %v1389 = vpack.c.b16 %v1093, %v1089
  %v1390 = vpack.c.b16 %v1094, %v1090
  %v1391 = vpack.c.b16 %v1099, %v1095
  %v1392 = vpack.c.b16 %v1100, %v1096
  %v1393 = vpack.c.b16 %v1101, %v1097
  %v1394 = vpack.c.b16 %v1102, %v1098
  %v1395 = vpack.c.b16 %v1107, %v1103
  %v1396 = vpack.c.b16 %v1108, %v1104
  %v1397 = vpack.c.b16 %v1109, %v1105
  %v1398 = vpack.c.b16 %v1110, %v1106
  %v1399 = vpack.c.b16 %v1115, %v1111
  %v1400 = vpack.c.b16 %v1116, %v1112
  %v1401 = vpack.c.b16 %v1117, %v1113
  %v1402 = vpack.c.b16 %v1118, %v1114
  %v1403 = vpack.c.b16 %v1123, %v1119
  %v1404 = vpack.c.b16 %v1124, %v1120
  %v1405 = vpack.c.b16 %v1125, %v1121
  %v1406 = vpack.c.b16 %v1126, %v1122
  %v1407 = vpack.c.b16 %v1131, %v1127
  %v1408 = vpack.c.b16 %v1132, %v1128
  %v1409 = vpack.c.b16 %v1133, %v1129
  %v1410 = vpack.c.b16 %v1134, %v1130
  %v1411 = vpack.c.b16 %v1139, %v1135
  %v1412 = vpack.c.b16 %v1140, %v1136
  %v1413 = vpack.c.b16 %v1141, %v1137
  %v1414 = vpack.c.b16 %v1142, %v1138
  %v1415 = vpack.c.b16 %v1147, %v1143
  %v1416 = vpack.c.b16 %v1148, %v1144
  %v1417 = vpack.c.b16 %v1149, %v1145
  %v1418 = vpack.c.b16 %v1150, %v1146
  %v1419 = vpack.c.b16 %v1155, %v1151
  %v1420 = vpack.c.b16 %v1156, %v1152
  %v1421 = vpack.c.b16 %v1157, %v1153
  %v1422 = vpack.c.b16 %v1158, %v1154
  %v1423 = vpack.c.b16 %v1163, %v1159
  %v1424 = vpack.c.b16 %v1164, %v1160
  %v1425 = vpack.c.b16 %v1165, %v1161
  %v1426 = vpack.c.b16 %v1166, %v1162
  %v1427 = vpack.c.b16 %v1171, %v1167
  %v1428 = vpack.c.b16 %v1172, %v1168
  %v1429 = vpack.c.b16 %v1173, %v1169
  %v1430 = vpack.c.b16 %v1174, %v1170
  %v1431 = vpack.c.b16 %v1179, %v1175
  %v1432 = vpack.c.b16 %v1180, %v1176
  %v1433 = vpack.c.b16 %v1181, %v1177
  %v1434 = vpack.c.b16 %v1182, %v1178
  %v1435 = vpack.c.b16 %v1187, %v1183
  %v1436 = vpack.c.b16 %v1188, %v1184
  %v1437 = vpack.c.b16 %v1189, %v1185
  %v1438 = vpack.c.b16 %v1190, %v1186
  %v1439 = vpack.c.b16 %v1195, %v1191
  %v1440 = vpack.c.b16 %v1196, %v1192
  %v1441 = vpack.c.b16 %v1197, %v1193
  %v1442 = vpack.c.b16 %v1198, %v1194
  %v1443 = vpack.c.b16 %v1203, %v1199
  %v1444 = vpack.c.b16 %v1204, %v1200
  %v1445 = vpack.c.b16 %v1205, %v1201
  %v1446 = vpack.c.b16 %v1206, %v1202
  %v1447 = vpack.c.b16 %v1211, %v1207
  %v1448 = vpack.c.b16 %v1212, %v1208
  %v1449 = vpack.c.b16 %v1213, %v1209
  %v1450 = vpack.c.b16 %v1214, %v1210
  %v1451 = vpack.c.b16 %v1219, %v1215
  %v1452 = vpack.c.b16 %v1220, %v1216
  %v1453 = vpack.c.b16 %v1221, %v1217
  %v1454 = vpack.c.b16 %v1222, %v1218
  %v1455 = vpack.c.b16 %v1227, %v1223
  %v1456 = vpack.c.b16 %v1228, %v1224
  %v1457 = vpack.c.b16 %v1229, %v1225
  %v1458 = vpack.c.b16 %v1230, %v1226
  %v1459 = vpack.c.b16 %v1235, %v1231
  %v1460 = vpack.c.b16 %v1236, %v1232
  %v1461 = vpack.c.b16 %v1237, %v1233
  %v1462 = vpack.c.b16 %v1238, %v1234
  %v1463 = vpack.c.b16 %v1243, %v1239
  %v1464 = vpack.c.b16 %v1244, %v1240
  %v1465 = vpack.c.b16 %v1245, %v1241
  %v1466 = vpack.c.b16 %v1246, %v1242
  %v1467 = vpack.c.b16 %v1251, %v1247
  %v1468 = vpack.c.b16 %v1252, %v1248
  %v1469 = vpack.c.b16 %v1253, %v1249
  %v1470 = vpack.c.b16 %v1254, %v1250
  %v1471 = vpack.c.b16 %v1259, %v1255
  %v1472 = vpack.c.b16 %v1260, %v1256
  %v1473 = vpack.c.b16 %v1261, %v1257
  %v1474 = vpack.c.b16 %v1262, %v1258
  %v1475 = vpack.c.b16 %v1267, %v1263
  %v1476 = vpack.c.b16 %v1268, %v1264
  %v1477 = vpack.c.b16 %v1269, %v1265
  %v1478 = vpack.c.b16 %v1270, %v1266
  %v1479 = vpack.c.b16 %v1275, %v1271
  %v1480 = vpack.c.b16 %v1276, %v1272
  %v1481 = vpack.c.b16 %v1277, %v1273
  %v1482 = vpack.c.b16 %v1278, %v1274
  %v1483 = vpack.c.b16 %v1283, %v1279
  %v1484 = vpack.c.b16 %v1284, %v1280
  %v1485 = vpack.c.b16 %v1285, %v1281
  %v1486 = vpack.c.b16 %v1286, %v1282
  %v1688 = vsel %vm209, %v486, 0
  %1690 = vmatpush.bf16.msra.mxu0 %v1315
  %1691 = vmatpush.bf16.msra.mxu0 %v1311
  %1692 = vmatpush.bf16.msra.mxu0 %v1307
  %1693 = vmatpush.bf16.msra.mxu0 %v1303
  %1694 = vmatpush.bf16.msra.mxu0 %v1299
  %1695 = vmatpush.bf16.msra.mxu0 %v1295
  %1696 = vmatpush.bf16.msra.mxu0 %v1291
  %1697 = vmatpush.bf16.msra.mxu0 %v1287
  %1698 = vmatmul.bf16.gmra.mxu0 %v480
  %v1699 = vpop.f32.mrf.mxu0
  %v1700 = vadd.f32 0.0, %v1699
  %v1701 = vpop.f32.mrf.mxu0
  %1702 = vdwg.mxu0
  %1703 = vmatpush.bf16.msra.mxu0 %v1347
  %1704 = vmatpush.bf16.msra.mxu0 %v1343
  %1705 = vmatpush.bf16.msra.mxu0 %v1339
  %1706 = vmatpush.bf16.msra.mxu0 %v1335
  %1707 = vmatpush.bf16.msra.mxu0 %v1331
  %1708 = vmatpush.bf16.msra.mxu0 %v1327
  %1709 = vmatpush.bf16.msra.mxu0 %v1323
  %1710 = vmatpush.bf16.msra.mxu0 %v1319
  %1711 = vmatmul.bf16.gmra.mxu0 %v481
  %v1712 = vpop.f32.mrf.mxu0
  %v1713 = vadd.f32 %v1700, %v1712
  %v1714 = vpop.f32.mrf.mxu0
  %1715 = vdwg.mxu0
  %1716 = vmatpush.bf16.msra.mxu0 %v1379
  %1717 = vmatpush.bf16.msra.mxu0 %v1375
  %1718 = vmatpush.bf16.msra.mxu0 %v1371
  %1719 = vmatpush.bf16.msra.mxu0 %v1367
  %1720 = vmatpush.bf16.msra.mxu0 %v1363
  %1721 = vmatpush.bf16.msra.mxu0 %v1359
  %1722 = vmatpush.bf16.msra.mxu0 %v1355
  %1723 = vmatpush.bf16.msra.mxu0 %v1351
  %1724 = vmatmul.bf16.gmra.mxu0 %v482
  %v1725 = vpop.f32.mrf.mxu0
  %v1726 = vadd.f32 %v1713, %v1725
  %v1727 = vpop.f32.mrf.mxu0
  %1728 = vdwg.mxu0
  %1729 = vmatpush.bf16.msra.mxu0 %v1411
  %1730 = vmatpush.bf16.msra.mxu0 %v1407
  %1731 = vmatpush.bf16.msra.mxu0 %v1403
  %1732 = vmatpush.bf16.msra.mxu0 %v1399
  %1733 = vmatpush.bf16.msra.mxu0 %v1395
  %1734 = vmatpush.bf16.msra.mxu0 %v1391
  %1735 = vmatpush.bf16.msra.mxu0 %v1387
  %1736 = vmatpush.bf16.msra.mxu0 %v1383
  %1737 = vmatmul.bf16.gmra.mxu0 %v483
  %v1738 = vpop.f32.mrf.mxu0
  %v1739 = vadd.f32 %v1726, %v1738
  %v1740 = vpop.f32.mrf.mxu0
  %1741 = vdwg.mxu0
  %1742 = vmatpush.bf16.msra.mxu0 %v1443
  %1743 = vmatpush.bf16.msra.mxu0 %v1439
  %1744 = vmatpush.bf16.msra.mxu0 %v1435
  %1745 = vmatpush.bf16.msra.mxu0 %v1431
  %1746 = vmatpush.bf16.msra.mxu0 %v1427
  %1747 = vmatpush.bf16.msra.mxu0 %v1423
  %1748 = vmatpush.bf16.msra.mxu0 %v1419
  %1749 = vmatpush.bf16.msra.mxu0 %v1415
  %1750 = vmatmul.bf16.gmra.mxu0 %v484
  %v1751 = vpop.f32.mrf.mxu0
  %v1752 = vadd.f32 %v1739, %v1751
  %v1753 = vpop.f32.mrf.mxu0
  %1754 = vdwg.mxu0
  %1755 = vmatpush.bf16.msra.mxu0 %v1475
  %1756 = vmatpush.bf16.msra.mxu0 %v1471
  %1757 = vmatpush.bf16.msra.mxu0 %v1467
  %1758 = vmatpush.bf16.msra.mxu0 %v1463
  %1759 = vmatpush.bf16.msra.mxu0 %v1459
  %1760 = vmatpush.bf16.msra.mxu0 %v1455
  %1761 = vmatpush.bf16.msra.mxu0 %v1451
  %1762 = vmatpush.bf16.msra.mxu0 %v1447
  %1763 = vmatmul.bf16.gmra.mxu0 %v485
  %v1764 = vpop.f32.mrf.mxu0
  %v1765 = vadd.f32 %v1752, %v1764
  %v1766 = vpop.f32.mrf.mxu0
  %1767 = vdwg.mxu0
  %1768 = vmatpush.bf16.msra.mxu0 0
  %1769 = vmatpush.bf16.msra.mxu0 0
  %1770 = vmatpush.bf16.msra.mxu0 0
  %1771 = vmatpush.bf16.msra.mxu0 0
  %1772 = vmatpush.bf16.msra.mxu0 0
  %1773 = vmatpush.bf16.msra.mxu0 0
  %1774 = vmatpush.bf16.msra.mxu0 %v1483
  %1775 = vmatpush.bf16.msra.mxu0 %v1479
  %1776 = vmatmul.bf16.gmra.mxu0 %v1688
  %v1777 = vpop.f32.mrf.mxu0
  %v1778 = vadd.f32 %v1765, %v1777
  %v1779 = vpop.f32.mrf.mxu0
  %1780 = vdwg.mxu0
  %1781 = vmatpush.bf16.msra.mxu0 %v1316
  %1782 = vmatpush.bf16.msra.mxu0 %v1312
  %1783 = vmatpush.bf16.msra.mxu0 %v1308
  %1784 = vmatpush.bf16.msra.mxu0 %v1304
  %1785 = vmatpush.bf16.msra.mxu0 %v1300
  %1786 = vmatpush.bf16.msra.mxu0 %v1296
  %1787 = vmatpush.bf16.msra.mxu0 %v1292
  %1788 = vmatpush.bf16.msra.mxu0 %v1288
  %1789 = vmatmul.bf16.gmra.mxu0 %v480
  %v1790 = vpop.f32.mrf.mxu0
  %v1791 = vadd.f32 0.0, %v1790
  %v1792 = vpop.f32.mrf.mxu0
  %1793 = vdwg.mxu0
  %1794 = vmatpush.bf16.msra.mxu0 %v1348
  %1795 = vmatpush.bf16.msra.mxu0 %v1344
  %1796 = vmatpush.bf16.msra.mxu0 %v1340
  %1797 = vmatpush.bf16.msra.mxu0 %v1336
  %1798 = vmatpush.bf16.msra.mxu0 %v1332
  %1799 = vmatpush.bf16.msra.mxu0 %v1328
  %1800 = vmatpush.bf16.msra.mxu0 %v1324
  %1801 = vmatpush.bf16.msra.mxu0 %v1320
  %1802 = vmatmul.bf16.gmra.mxu0 %v481
  %v1803 = vpop.f32.mrf.mxu0
  %v1804 = vadd.f32 %v1791, %v1803
  %v1805 = vpop.f32.mrf.mxu0
  %1806 = vdwg.mxu0
  %1807 = vmatpush.bf16.msra.mxu0 %v1380
  %1808 = vmatpush.bf16.msra.mxu0 %v1376
  %1809 = vmatpush.bf16.msra.mxu0 %v1372
  %1810 = vmatpush.bf16.msra.mxu0 %v1368
  %1811 = vmatpush.bf16.msra.mxu0 %v1364
  %1812 = vmatpush.bf16.msra.mxu0 %v1360
  %1813 = vmatpush.bf16.msra.mxu0 %v1356
  %1814 = vmatpush.bf16.msra.mxu0 %v1352
  %1815 = vmatmul.bf16.gmra.mxu0 %v482
  %v1816 = vpop.f32.mrf.mxu0
  %v1817 = vadd.f32 %v1804, %v1816
  %v1818 = vpop.f32.mrf.mxu0
  %1819 = vdwg.mxu0
  %1820 = vmatpush.bf16.msra.mxu0 %v1412
  %1821 = vmatpush.bf16.msra.mxu0 %v1408
  %1822 = vmatpush.bf16.msra.mxu0 %v1404
  %1823 = vmatpush.bf16.msra.mxu0 %v1400
  %1824 = vmatpush.bf16.msra.mxu0 %v1396
  %1825 = vmatpush.bf16.msra.mxu0 %v1392
  %1826 = vmatpush.bf16.msra.mxu0 %v1388
  %1827 = vmatpush.bf16.msra.mxu0 %v1384
  %1828 = vmatmul.bf16.gmra.mxu0 %v483
  %v1829 = vpop.f32.mrf.mxu0
  %v1830 = vadd.f32 %v1817, %v1829
  %v1831 = vpop.f32.mrf.mxu0
  %1832 = vdwg.mxu0
  %1833 = vmatpush.bf16.msra.mxu0 %v1444
  %1834 = vmatpush.bf16.msra.mxu0 %v1440
  %1835 = vmatpush.bf16.msra.mxu0 %v1436
  %1836 = vmatpush.bf16.msra.mxu0 %v1432
  %1837 = vmatpush.bf16.msra.mxu0 %v1428
  %1838 = vmatpush.bf16.msra.mxu0 %v1424
  %1839 = vmatpush.bf16.msra.mxu0 %v1420
  %1840 = vmatpush.bf16.msra.mxu0 %v1416
  %1841 = vmatmul.bf16.gmra.mxu0 %v484
  %v1842 = vpop.f32.mrf.mxu0
  %v1843 = vadd.f32 %v1830, %v1842
  %v1844 = vpop.f32.mrf.mxu0
  %1845 = vdwg.mxu0
  %1846 = vmatpush.bf16.msra.mxu0 %v1476
  %1847 = vmatpush.bf16.msra.mxu0 %v1472
  %1848 = vmatpush.bf16.msra.mxu0 %v1468
  %1849 = vmatpush.bf16.msra.mxu0 %v1464
  %1850 = vmatpush.bf16.msra.mxu0 %v1460
  %1851 = vmatpush.bf16.msra.mxu0 %v1456
  %1852 = vmatpush.bf16.msra.mxu0 %v1452
  %1853 = vmatpush.bf16.msra.mxu0 %v1448
  %1854 = vmatmul.bf16.gmra.mxu0 %v485
  %v1855 = vpop.f32.mrf.mxu0
  %v1856 = vadd.f32 %v1843, %v1855
  %v1857 = vpop.f32.mrf.mxu0
  %1858 = vdwg.mxu0
  %1859 = vmatpush.bf16.msra.mxu0 0
  %1860 = vmatpush.bf16.msra.mxu0 0
  %1861 = vmatpush.bf16.msra.mxu0 0
  %1862 = vmatpush.bf16.msra.mxu0 0
  %1863 = vmatpush.bf16.msra.mxu0 0
  %1864 = vmatpush.bf16.msra.mxu0 0
  %1865 = vmatpush.bf16.msra.mxu0 %v1484
  %1866 = vmatpush.bf16.msra.mxu0 %v1480
  %1867 = vmatmul.bf16.gmra.mxu0 %v1688
  %v1868 = vpop.f32.mrf.mxu0
  %v1869 = vadd.f32 %v1856, %v1868
  %v1870 = vpop.f32.mrf.mxu0
  %1871 = vdwg.mxu0
  %1872 = vmatpush.bf16.msra.mxu0 %v1317
  %1873 = vmatpush.bf16.msra.mxu0 %v1313
  %1874 = vmatpush.bf16.msra.mxu0 %v1309
  %1875 = vmatpush.bf16.msra.mxu0 %v1305
  %1876 = vmatpush.bf16.msra.mxu0 %v1301
  %1877 = vmatpush.bf16.msra.mxu0 %v1297
  %1878 = vmatpush.bf16.msra.mxu0 %v1293
  %1879 = vmatpush.bf16.msra.mxu0 %v1289
  %1880 = vmatmul.bf16.gmra.mxu0 %v480
  %v1881 = vpop.f32.mrf.mxu0
  %v1882 = vadd.f32 0.0, %v1881
  %v1883 = vpop.f32.mrf.mxu0
  %1884 = vdwg.mxu0
  %1885 = vmatpush.bf16.msra.mxu0 %v1349
  %1886 = vmatpush.bf16.msra.mxu0 %v1345
  %1887 = vmatpush.bf16.msra.mxu0 %v1341
  %1888 = vmatpush.bf16.msra.mxu0 %v1337
  %1889 = vmatpush.bf16.msra.mxu0 %v1333
  %1890 = vmatpush.bf16.msra.mxu0 %v1329
  %1891 = vmatpush.bf16.msra.mxu0 %v1325
  %1892 = vmatpush.bf16.msra.mxu0 %v1321
  %1893 = vmatmul.bf16.gmra.mxu0 %v481
  %v1894 = vpop.f32.mrf.mxu0
  %v1895 = vadd.f32 %v1882, %v1894
  %v1896 = vpop.f32.mrf.mxu0
  %1897 = vdwg.mxu0
  %1898 = vmatpush.bf16.msra.mxu0 %v1381
  %1899 = vmatpush.bf16.msra.mxu0 %v1377
  %1900 = vmatpush.bf16.msra.mxu0 %v1373
  %1901 = vmatpush.bf16.msra.mxu0 %v1369
  %1902 = vmatpush.bf16.msra.mxu0 %v1365
  %1903 = vmatpush.bf16.msra.mxu0 %v1361
  %1904 = vmatpush.bf16.msra.mxu0 %v1357
  %1905 = vmatpush.bf16.msra.mxu0 %v1353
  %1906 = vmatmul.bf16.gmra.mxu0 %v482
  %v1907 = vpop.f32.mrf.mxu0
  %v1908 = vadd.f32 %v1895, %v1907
  %v1909 = vpop.f32.mrf.mxu0
  %1910 = vdwg.mxu0
  %1911 = vmatpush.bf16.msra.mxu0 %v1413
  %1912 = vmatpush.bf16.msra.mxu0 %v1409
  %1913 = vmatpush.bf16.msra.mxu0 %v1405
  %1914 = vmatpush.bf16.msra.mxu0 %v1401
  %1915 = vmatpush.bf16.msra.mxu0 %v1397
  %1916 = vmatpush.bf16.msra.mxu0 %v1393
  %1917 = vmatpush.bf16.msra.mxu0 %v1389
  %1918 = vmatpush.bf16.msra.mxu0 %v1385
  %1919 = vmatmul.bf16.gmra.mxu0 %v483
  %v1920 = vpop.f32.mrf.mxu0
  %v1921 = vadd.f32 %v1908, %v1920
  %v1922 = vpop.f32.mrf.mxu0
  %1923 = vdwg.mxu0
  %1924 = vmatpush.bf16.msra.mxu0 %v1445
  %1925 = vmatpush.bf16.msra.mxu0 %v1441
  %1926 = vmatpush.bf16.msra.mxu0 %v1437
  %1927 = vmatpush.bf16.msra.mxu0 %v1433
  %1928 = vmatpush.bf16.msra.mxu0 %v1429
  %1929 = vmatpush.bf16.msra.mxu0 %v1425
  %1930 = vmatpush.bf16.msra.mxu0 %v1421
  %1931 = vmatpush.bf16.msra.mxu0 %v1417
  %1932 = vmatmul.bf16.gmra.mxu0 %v484
  %v1933 = vpop.f32.mrf.mxu0
  %v1934 = vadd.f32 %v1921, %v1933
  %v1935 = vpop.f32.mrf.mxu0
  %1936 = vdwg.mxu0
  %1937 = vmatpush.bf16.msra.mxu0 %v1477
  %1938 = vmatpush.bf16.msra.mxu0 %v1473
  %1939 = vmatpush.bf16.msra.mxu0 %v1469
  %1940 = vmatpush.bf16.msra.mxu0 %v1465
  %1941 = vmatpush.bf16.msra.mxu0 %v1461
  %1942 = vmatpush.bf16.msra.mxu0 %v1457
  %1943 = vmatpush.bf16.msra.mxu0 %v1453
  %1944 = vmatpush.bf16.msra.mxu0 %v1449
  %1945 = vmatmul.bf16.gmra.mxu0 %v485
  %v1946 = vpop.f32.mrf.mxu0
  %v1947 = vadd.f32 %v1934, %v1946
  %v1948 = vpop.f32.mrf.mxu0
  %1949 = vdwg.mxu0
  %1950 = vmatpush.bf16.msra.mxu0 0
  %1951 = vmatpush.bf16.msra.mxu0 0
  %1952 = vmatpush.bf16.msra.mxu0 0
  %1953 = vmatpush.bf16.msra.mxu0 0
  %1954 = vmatpush.bf16.msra.mxu0 0
  %1955 = vmatpush.bf16.msra.mxu0 0
  %1956 = vmatpush.bf16.msra.mxu0 %v1485
  %1957 = vmatpush.bf16.msra.mxu0 %v1481
  %1958 = vmatmul.bf16.gmra.mxu0 %v1688
  %v1959 = vpop.f32.mrf.mxu0
  %v1960 = vadd.f32 %v1947, %v1959
  %v1961 = vpop.f32.mrf.mxu0
  %1962 = vdwg.mxu0
  %1963 = vmatpush.bf16.msra.mxu0 %v1318
  %1964 = vmatpush.bf16.msra.mxu0 %v1314
  %1965 = vmatpush.bf16.msra.mxu0 %v1310
  %1966 = vmatpush.bf16.msra.mxu0 %v1306
  %1967 = vmatpush.bf16.msra.mxu0 %v1302
  %1968 = vmatpush.bf16.msra.mxu0 %v1298
  %1969 = vmatpush.bf16.msra.mxu0 %v1294
  %1970 = vmatpush.bf16.msra.mxu0 %v1290
  %1971 = vmatmul.bf16.gmra.mxu0 %v480
  %v1972 = vpop.f32.mrf.mxu0
  %v1973 = vadd.f32 0.0, %v1972
  %v1974 = vpop.f32.mrf.mxu0
  %1975 = vdwg.mxu0
  %1976 = vmatpush.bf16.msra.mxu0 %v1350
  %1977 = vmatpush.bf16.msra.mxu0 %v1346
  %1978 = vmatpush.bf16.msra.mxu0 %v1342
  %1979 = vmatpush.bf16.msra.mxu0 %v1338
  %1980 = vmatpush.bf16.msra.mxu0 %v1334
  %1981 = vmatpush.bf16.msra.mxu0 %v1330
  %1982 = vmatpush.bf16.msra.mxu0 %v1326
  %1983 = vmatpush.bf16.msra.mxu0 %v1322
  %1984 = vmatmul.bf16.gmra.mxu0 %v481
  %v1985 = vpop.f32.mrf.mxu0
  %v1986 = vadd.f32 %v1973, %v1985
  %v1987 = vpop.f32.mrf.mxu0
  %1988 = vdwg.mxu0
  %1989 = vmatpush.bf16.msra.mxu0 %v1382
  %1990 = vmatpush.bf16.msra.mxu0 %v1378
  %1991 = vmatpush.bf16.msra.mxu0 %v1374
  %1992 = vmatpush.bf16.msra.mxu0 %v1370
  %1993 = vmatpush.bf16.msra.mxu0 %v1366
  %1994 = vmatpush.bf16.msra.mxu0 %v1362
  %1995 = vmatpush.bf16.msra.mxu0 %v1358
  %1996 = vmatpush.bf16.msra.mxu0 %v1354
  %1997 = vmatmul.bf16.gmra.mxu0 %v482
  %v1998 = vpop.f32.mrf.mxu0
  %v1999 = vadd.f32 %v1986, %v1998
  %v2000 = vpop.f32.mrf.mxu0
  %2001 = vdwg.mxu0
  %2002 = vmatpush.bf16.msra.mxu0 %v1414
  %2003 = vmatpush.bf16.msra.mxu0 %v1410
  %2004 = vmatpush.bf16.msra.mxu0 %v1406
  %2005 = vmatpush.bf16.msra.mxu0 %v1402
  %2006 = vmatpush.bf16.msra.mxu0 %v1398
  %2007 = vmatpush.bf16.msra.mxu0 %v1394
  %2008 = vmatpush.bf16.msra.mxu0 %v1390
  %2009 = vmatpush.bf16.msra.mxu0 %v1386
  %2010 = vmatmul.bf16.gmra.mxu0 %v483
  %v2011 = vpop.f32.mrf.mxu0
  %v2012 = vadd.f32 %v1999, %v2011
  %v2013 = vpop.f32.mrf.mxu0
  %2014 = vdwg.mxu0
  %2015 = vmatpush.bf16.msra.mxu0 %v1446
  %2016 = vmatpush.bf16.msra.mxu0 %v1442
  %2017 = vmatpush.bf16.msra.mxu0 %v1438
  %2018 = vmatpush.bf16.msra.mxu0 %v1434
  %2019 = vmatpush.bf16.msra.mxu0 %v1430
  %2020 = vmatpush.bf16.msra.mxu0 %v1426
  %2021 = vmatpush.bf16.msra.mxu0 %v1422
  %2022 = vmatpush.bf16.msra.mxu0 %v1418
  %2023 = vmatmul.bf16.gmra.mxu0 %v484
  %v2024 = vpop.f32.mrf.mxu0
  %v2025 = vadd.f32 %v2012, %v2024
  %v2026 = vpop.f32.mrf.mxu0
  %2027 = vdwg.mxu0
  %2028 = vmatpush.bf16.msra.mxu0 %v1478
  %2029 = vmatpush.bf16.msra.mxu0 %v1474
  %2030 = vmatpush.bf16.msra.mxu0 %v1470
  %2031 = vmatpush.bf16.msra.mxu0 %v1466
  %2032 = vmatpush.bf16.msra.mxu0 %v1462
  %2033 = vmatpush.bf16.msra.mxu0 %v1458
  %2034 = vmatpush.bf16.msra.mxu0 %v1454
  %2035 = vmatpush.bf16.msra.mxu0 %v1450
  %2036 = vmatmul.bf16.gmra.mxu0 %v485
  %v2037 = vpop.f32.mrf.mxu0
  %v2038 = vadd.f32 %v2025, %v2037
  %v2039 = vpop.f32.mrf.mxu0
  %2040 = vdwg.mxu0
  %2041 = vmatpush.bf16.msra.mxu0 0
  %2042 = vmatpush.bf16.msra.mxu0 0
  %2043 = vmatpush.bf16.msra.mxu0 0
  %2044 = vmatpush.bf16.msra.mxu0 0
  %2045 = vmatpush.bf16.msra.mxu0 0
  %2046 = vmatpush.bf16.msra.mxu0 0
  %2047 = vmatpush.bf16.msra.mxu0 %v1486
  %2048 = vmatpush.bf16.msra.mxu0 %v1482
  %2049 = vmatmul.bf16.gmra.mxu0 %v1688
  %v2050 = vpop.f32.mrf.mxu0
  %v2051 = vadd.f32 %v2038, %v2050
  %v2052 = vpop.f32.mrf.mxu0
  %2053 = vdwg.mxu0
  %v2054 = vrot.slane %v1778, 4
  %v2055 = vadd.f32 %v1778, %v2054
  %v2056 = vrot.slane %v2055, 2
  %v2057 = vadd.f32 %v2055, %v2056
  %v2058 = vrot.slane %v2057, 1
  %v2059 = vadd.f32 %v2057, %v2058
  %v2060 = vrot.slane %v1869, 4
  %v2061 = vadd.f32 %v1869, %v2060
  %v2062 = vrot.slane %v2061, 2
  %v2063 = vadd.f32 %v2061, %v2062
  %v2064 = vrot.slane %v2063, 1
  %v2065 = vadd.f32 %v2063, %v2064
  %v2066 = vrot.slane %v1960, 4
  %v2067 = vadd.f32 %v1960, %v2066
  %v2068 = vrot.slane %v2067, 2
  %v2069 = vadd.f32 %v2067, %v2068
  %v2070 = vrot.slane %v2069, 1
  %v2071 = vadd.f32 %v2069, %v2070
  %v2072 = vsel %vm78, %v2051, 0.0
  %v2073 = vrot.slane %v2072, 4
  %v2074 = vadd.f32 %v2072, %v2073
  %v2075 = vrot.slane %v2074, 2
  %v2076 = vadd.f32 %v2074, %v2075
  %v2077 = vrot.slane %v2076, 1
  %v2078 = vadd.f32 %v2076, %v2077
  %v2079 = vmul.f32 %v1778, %v1778
  %v2080 = vmul.f32 %v1869, %v1869
  %v2081 = vmul.f32 %v1960, %v1960
  %v2082 = vmul.f32 %v2051, %v2051
  %v2083 = vrot.slane %v2079, 4
  %v2084 = vadd.f32 %v2079, %v2083
  %v2085 = vrot.slane %v2084, 2
  %v2086 = vadd.f32 %v2084, %v2085
  %v2087 = vrot.slane %v2086, 1
  %v2088 = vadd.f32 %v2086, %v2087
  %v2089 = vrot.slane %v2080, 4
  %v2090 = vadd.f32 %v2080, %v2089
  %v2091 = vrot.slane %v2090, 2
  %v2092 = vadd.f32 %v2090, %v2091
  %v2093 = vrot.slane %v2092, 1
  %v2094 = vadd.f32 %v2092, %v2093
  %v2095 = vrot.slane %v2081, 4
  %v2096 = vadd.f32 %v2081, %v2095
  %v2097 = vrot.slane %v2096, 2
  %v2098 = vadd.f32 %v2096, %v2097
  %v2099 = vrot.slane %v2098, 1
  %v2100 = vadd.f32 %v2098, %v2099
  %v2101 = vsel %vm78, %v2082, 0.0
  %v2102 = vrot.slane %v2101, 4
  %v2103 = vadd.f32 %v2101, %v2102
  %v2104 = vrot.slane %v2103, 2
  %v2105 = vadd.f32 %v2103, %v2104
  %v2106 = vrot.slane %v2105, 1
  %v2107 = vadd.f32 %v2105, %v2106
  %v2108 = vld [vmem:[%s5] sm:$0xf]
  %v2109 = vld [vmem:[%s6] sm:$0xf]
  %v2110 = vmul.f32 %v2059, 0.125
  %v2111 = vmul.f32 %v2065, 0.125
  %v2112 = vmul.f32 %v2071, 0.125
  %v2113 = vmul.f32 %v2078, 0.125
  %v2114 = vmul.f32 %v2088, 0.125
  %v2115 = vmul.f32 %v2094, 0.125
  %v2116 = vmul.f32 %v2100, 0.125
  %v2117 = vmul.f32 %v2107, 0.125
  %v2118 = vmul.f32 %v2110, %v2110
  %v2119 = vmul.f32 %v2111, %v2111
  %v2120 = vmul.f32 %v2112, %v2112
  %v2121 = vmul.f32 %v2113, %v2113
  %v2122 = vsub.f32 %v2114, %v2118
  %v2123 = vsub.f32 %v2115, %v2119
  %v2124 = vsub.f32 %v2116, %v2120
  %v2125 = vsub.f32 %v2117, %v2121
  %v2126 = vadd.f32 %v2122, 1e-05
  %v2127 = vadd.f32 %v2123, 1e-05
  %v2128 = vadd.f32 %v2124, 1e-05
  %v2129 = vadd.f32 %v2125, 1e-05
  %v2130 = vrsqrt.pop %v2126
  %v2131 = vmul.f32 %v2130, %v2126
  %v2132 = vmul.f32 %v2131, %v2130
  %v2133 = vmul.f32 0.5, %v2132
  %v2134 = vsub.f32 1.5, %v2133
  %v2135 = vmul.f32 %v2130, %v2134
  %vm2136 = vweird.f32 %v2126
  %vm2137 = vweird.f32 %v2130
  %vm2138 = vmor %vm2136, %vm2137
  %v2139 = vsel %vm2138, %v2130, %v2135
  %v2140 = vrsqrt.pop %v2127
  %v2141 = vmul.f32 %v2140, %v2127
  %v2142 = vmul.f32 %v2141, %v2140
  %v2143 = vmul.f32 0.5, %v2142
  %v2144 = vsub.f32 1.5, %v2143
  %v2145 = vmul.f32 %v2140, %v2144
  %vm2146 = vweird.f32 %v2127
  %vm2147 = vweird.f32 %v2140
  %vm2148 = vmor %vm2146, %vm2147
  %v2149 = vsel %vm2148, %v2140, %v2145
  %v2150 = vrsqrt.pop %v2128
  %v2151 = vmul.f32 %v2150, %v2128
  %v2152 = vmul.f32 %v2151, %v2150
  %v2153 = vmul.f32 0.5, %v2152
  %v2154 = vsub.f32 1.5, %v2153
  %v2155 = vmul.f32 %v2150, %v2154
  %vm2156 = vweird.f32 %v2128
  %vm2157 = vweird.f32 %v2150
  %vm2158 = vmor %vm2156, %vm2157
  %v2159 = vsel %vm2158, %v2150, %v2155
  %v2160 = vrsqrt.pop %v2129
  %v2161 = vmul.f32 %v2160, %v2129
  %v2162 = vmul.f32 %v2161, %v2160
  %v2163 = vmul.f32 0.5, %v2162
  %v2164 = vsub.f32 1.5, %v2163
  %v2165 = vmul.f32 %v2160, %v2164
  %vm2166 = vweird.f32 %v2129
  %vm2167 = vweird.f32 %v2160
  %vm2168 = vmor %vm2166, %vm2167
  %v2169 = vsel %vm2168, %v2160, %v2165
  %v2174 = vrot.slane %v2149, 7
  %v2175 = vrot.slane %v2159, 6
  %v2176 = vrot.slane %v2169, 5
  %v2177 = vsel %vm387, %v2139, %v2174
  %v2178 = vsel %vm389, %v2175, %v2176
  %v2179 = vsel %vm391, %v2177, %v2178
  %v2181 = vmul.f32 %v2108, %v2179
  %v2183 = vperm.slane %v2181, 0
  %v2184 = vperm.slane %v2181, 1
  %v2185 = vperm.slane %v2181, 2
  %v2186 = vperm.slane %v2181, 3
  %v2191 = vmul.f32 %v2110, %v2183
  %v2192 = vmul.f32 %v2111, %v2184
  %v2193 = vmul.f32 %v2112, %v2185
  %v2194 = vmul.f32 %v2113, %v2186
  %v2199 = vrot.slane %v2192, 7
  %v2200 = vrot.slane %v2193, 6
  %v2201 = vrot.slane %v2194, 5
  %v2202 = vsel %vm387, %v2191, %v2199
  %v2203 = vsel %vm389, %v2200, %v2201
  %v2204 = vsel %vm391, %v2202, %v2203
  %v2206 = vsub.f32 %v2109, %v2204
  %v2207 = vmul.f32 %v1778, %v2183
  %v2208 = vmul.f32 %v1869, %v2184
  %v2209 = vmul.f32 %v1960, %v2185
  %v2210 = vmul.f32 %v2051, %v2186
  %v2212 = vperm.slane %v2206, 0
  %v2213 = vperm.slane %v2206, 1
  %v2214 = vperm.slane %v2206, 2
  %v2215 = vperm.slane %v2206, 3
  %v2220 = vadd.f32 %v2207, %v2212
  %v2221 = vadd.f32 %v2208, %v2213
  %v2222 = vadd.f32 %v2209, %v2214
  %v2223 = vadd.f32 %v2210, %v2215
  %v2224 = vmax.f32 %v2220, 0.0
  %v2225 = vmax.f32 %v2221, 0.0
  %v2226 = vmax.f32 %v2222, 0.0
  %v2227 = vmax.f32 %v2223, 0.0
  %v2228 = vpack.c.bf16 %v2224, %v2224
  %v2229 = vpack.c.bf16 %v2225, %v2225
  %v2230 = vpack.c.bf16 %v2226, %v2226
  %v2231 = vpack.c.bf16 %v2227, %v2227
  %v2232 = vld [vmem:[%s7] sm:$0xf]
  %v2233 = vld [vmem:[%s7 + $0x4] sm:$0xf]
  %v2234 = vld [vmem:[%s7 + $0x8] sm:$0xf]
  %v2235 = vld [vmem:[%s7 + $0xc] sm:$0xf]
  %v2236 = vld [vmem:[%s7 + $0x10] sm:$0xf]
  %v2237 = vld [vmem:[%s7 + $0x14] sm:$0xf]
  %v2238 = vld [vmem:[%s7 + $0x18] sm:$0xf]
  %v2239 = vld [vmem:[%s7 + $0x1c] sm:$0xf]
  %v2240 = vld [vmem:[%s7 + $0x20] sm:$0xf]
  %v2241 = vld [vmem:[%s7 + $0x24] sm:$0xf]
  %v2242 = vld [vmem:[%s7 + $0x28] sm:$0xf]
  %v2243 = vld [vmem:[%s7 + $0x2c] sm:$0xf]
  %v2244 = vld [vmem:[%s7 + $0x30] sm:$0xf]
  %v2245 = vld [vmem:[%s7 + $0x34] sm:$0xf]
  %v2246 = vld [vmem:[%s7 + $0x38] sm:$0xf]
  %v2247 = vld [vmem:[%s7 + $0x3c] sm:$0xf]
  %v2248 = vld [vmem:[%s7 + $0x40] sm:$0xf]
  %v2249 = vld [vmem:[%s7 + $0x44] sm:$0xf]
  %v2250 = vld [vmem:[%s7 + $0x48] sm:$0xf]
  %v2251 = vld [vmem:[%s7 + $0x4c] sm:$0xf]
  %v2252 = vld [vmem:[%s7 + $0x50] sm:$0xf]
  %v2253 = vld [vmem:[%s7 + $0x54] sm:$0xf]
  %v2254 = vld [vmem:[%s7 + $0x58] sm:$0xf]
  %v2255 = vld [vmem:[%s7 + $0x5c] sm:$0xf]
  %v2256 = vld [vmem:[%s7 + $0x60] sm:$0xf]
  %v2257 = vld [vmem:[%s7 + $0x64] sm:$0xf]
  %v2258 = vld [vmem:[%s7 + $0x68] sm:$0xf]
  %v2259 = vld [vmem:[%s7 + $0x6c] sm:$0xf]
  %v2260 = vld [vmem:[%s7 + $0x70] sm:$0xf]
  %v2261 = vld [vmem:[%s7 + $0x74] sm:$0xf]
  %v2262 = vld [vmem:[%s7 + $0x78] sm:$0xf]
  %v2263 = vld [vmem:[%s7 + $0x7c] sm:$0xf]
  %v2264 = vld [vmem:[%s7 + $0x80] sm:$0xf]
  %v2265 = vld [vmem:[%s7 + $0x84] sm:$0xf]
  %v2266 = vld [vmem:[%s7 + $0x88] sm:$0xf]
  %v2267 = vld [vmem:[%s7 + $0x8c] sm:$0xf]
  %v2268 = vld [vmem:[%s7 + $0x90] sm:$0xf]
  %v2269 = vld [vmem:[%s7 + $0x94] sm:$0xf]
  %v2270 = vld [vmem:[%s7 + $0x98] sm:$0xf]
  %v2271 = vld [vmem:[%s7 + $0x9c] sm:$0xf]
  %v2272 = vld [vmem:[%s7 + $0xa0] sm:$0xf]
  %v2273 = vld [vmem:[%s7 + $0xa4] sm:$0xf]
  %v2274 = vld [vmem:[%s7 + $0xa8] sm:$0xf]
  %v2275 = vld [vmem:[%s7 + $0xac] sm:$0xf]
  %v2276 = vld [vmem:[%s7 + $0xb0] sm:$0xf]
  %v2277 = vld [vmem:[%s7 + $0xb4] sm:$0xf]
  %v2278 = vld [vmem:[%s7 + $0xb8] sm:$0xf]
  %v2279 = vld [vmem:[%s7 + $0xbc] sm:$0xf]
  %v2280 = vld [vmem:[%s7 + $0xc0] sm:$0xf]
  %v2281 = vld [vmem:[%s7 + $0xc4] sm:$0xf]
  %v2282 = vld [vmem:[%s8] sm:$0x1]
  %v2284 = vperm.slane %v2282, 0
  %v2336 = vunpack.c.l.b16 %v2232
  %v2337 = vunpack.c.l.b16 %v2233
  %v2338 = vunpack.c.l.b16 %v2234
  %v2339 = vunpack.c.l.b16 %v2235
  %v2340 = vunpack.c.l.b16 %v2236
  %v2341 = vunpack.c.l.b16 %v2237
  %v2342 = vunpack.c.l.b16 %v2238
  %v2343 = vunpack.c.l.b16 %v2239
  %v2344 = vunpack.c.l.b16 %v2240
  %v2345 = vunpack.c.l.b16 %v2241
  %v2346 = vunpack.c.l.b16 %v2242
  %v2347 = vunpack.c.l.b16 %v2243
  %v2348 = vunpack.c.l.b16 %v2244
  %v2349 = vunpack.c.l.b16 %v2245
  %v2350 = vunpack.c.l.b16 %v2246
  %v2351 = vunpack.c.l.b16 %v2247
  %v2352 = vunpack.c.l.b16 %v2248
  %v2353 = vunpack.c.l.b16 %v2249
  %v2354 = vunpack.c.l.b16 %v2250
  %v2355 = vunpack.c.l.b16 %v2251
  %v2356 = vunpack.c.l.b16 %v2252
  %v2357 = vunpack.c.l.b16 %v2253
  %v2358 = vunpack.c.l.b16 %v2254
  %v2359 = vunpack.c.l.b16 %v2255
  %v2360 = vunpack.c.l.b16 %v2256
  %v2361 = vunpack.c.l.b16 %v2257
  %v2362 = vunpack.c.l.b16 %v2258
  %v2363 = vunpack.c.l.b16 %v2259
  %v2364 = vunpack.c.l.b16 %v2260
  %v2365 = vunpack.c.l.b16 %v2261
  %v2366 = vunpack.c.l.b16 %v2262
  %v2367 = vunpack.c.l.b16 %v2263
  %v2368 = vunpack.c.l.b16 %v2264
  %v2369 = vunpack.c.l.b16 %v2265
  %v2370 = vunpack.c.l.b16 %v2266
  %v2371 = vunpack.c.l.b16 %v2267
  %v2372 = vunpack.c.l.b16 %v2268
  %v2373 = vunpack.c.l.b16 %v2269
  %v2374 = vunpack.c.l.b16 %v2270
  %v2375 = vunpack.c.l.b16 %v2271
  %v2376 = vunpack.c.l.b16 %v2272
  %v2377 = vunpack.c.l.b16 %v2273
  %v2378 = vunpack.c.l.b16 %v2274
  %v2379 = vunpack.c.l.b16 %v2275
  %v2380 = vunpack.c.l.b16 %v2276
  %v2381 = vunpack.c.l.b16 %v2277
  %v2382 = vunpack.c.l.b16 %v2278
  %v2383 = vunpack.c.l.b16 %v2279
  %v2384 = vunpack.c.l.b16 %v2280
  %v2385 = vunpack.c.l.b16 %v2281
  %v2386 = vpack.c.b16 %v2337, %v2336
  %v2387 = vpack.c.b16 %v2339, %v2338
  %v2388 = vpack.c.b16 %v2341, %v2340
  %v2389 = vpack.c.b16 %v2343, %v2342
  %v2390 = vpack.c.b16 %v2345, %v2344
  %v2391 = vpack.c.b16 %v2347, %v2346
  %v2392 = vpack.c.b16 %v2349, %v2348
  %v2393 = vpack.c.b16 %v2351, %v2350
  %v2394 = vpack.c.b16 %v2353, %v2352
  %v2395 = vpack.c.b16 %v2355, %v2354
  %v2396 = vpack.c.b16 %v2357, %v2356
  %v2397 = vpack.c.b16 %v2359, %v2358
  %v2398 = vpack.c.b16 %v2361, %v2360
  %v2399 = vpack.c.b16 %v2363, %v2362
  %v2400 = vpack.c.b16 %v2365, %v2364
  %v2401 = vpack.c.b16 %v2367, %v2366
  %v2402 = vpack.c.b16 %v2369, %v2368
  %v2403 = vpack.c.b16 %v2371, %v2370
  %v2404 = vpack.c.b16 %v2373, %v2372
  %v2405 = vpack.c.b16 %v2375, %v2374
  %v2406 = vpack.c.b16 %v2377, %v2376
  %v2407 = vpack.c.b16 %v2379, %v2378
  %v2408 = vpack.c.b16 %v2381, %v2380
  %v2409 = vpack.c.b16 %v2383, %v2382
  %v2410 = vpack.c.b16 %v2385, %v2384
  %v2437 = vsel %vm78, %v2231, 0
  %2439 = vmatpush.bf16.msra.mxu0 %v2393
  %2440 = vmatpush.bf16.msra.mxu0 %v2392
  %2441 = vmatpush.bf16.msra.mxu0 %v2391
  %2442 = vmatpush.bf16.msra.mxu0 %v2390
  %2443 = vmatpush.bf16.msra.mxu0 %v2389
  %2444 = vmatpush.bf16.msra.mxu0 %v2388
  %2445 = vmatpush.bf16.msra.mxu0 %v2387
  %2446 = vmatpush.bf16.msra.mxu0 %v2386
  %2447 = vmatmul.bf16.gmra.mxu0 %v2228
  %v2448 = vpop.f32.mrf.mxu0
  %v2449 = vadd.f32 %v2284, %v2448
  %v2450 = vpop.f32.mrf.mxu0
  %2451 = vdwg.mxu0
  %2452 = vmatpush.bf16.msra.mxu0 %v2401
  %2453 = vmatpush.bf16.msra.mxu0 %v2400
  %2454 = vmatpush.bf16.msra.mxu0 %v2399
  %2455 = vmatpush.bf16.msra.mxu0 %v2398
  %2456 = vmatpush.bf16.msra.mxu0 %v2397
  %2457 = vmatpush.bf16.msra.mxu0 %v2396
  %2458 = vmatpush.bf16.msra.mxu0 %v2395
  %2459 = vmatpush.bf16.msra.mxu0 %v2394
  %2460 = vmatmul.bf16.gmra.mxu0 %v2229
  %v2461 = vpop.f32.mrf.mxu0
  %v2462 = vadd.f32 %v2449, %v2461
  %v2463 = vpop.f32.mrf.mxu0
  %2464 = vdwg.mxu0
  %2465 = vmatpush.bf16.msra.mxu0 %v2409
  %2466 = vmatpush.bf16.msra.mxu0 %v2408
  %2467 = vmatpush.bf16.msra.mxu0 %v2407
  %2468 = vmatpush.bf16.msra.mxu0 %v2406
  %2469 = vmatpush.bf16.msra.mxu0 %v2405
  %2470 = vmatpush.bf16.msra.mxu0 %v2404
  %2471 = vmatpush.bf16.msra.mxu0 %v2403
  %2472 = vmatpush.bf16.msra.mxu0 %v2402
  %2473 = vmatmul.bf16.gmra.mxu0 %v2230
  %v2474 = vpop.f32.mrf.mxu0
  %v2475 = vadd.f32 %v2462, %v2474
  %v2476 = vpop.f32.mrf.mxu0
  %2477 = vdwg.mxu0
  %2478 = vmatpush.bf16.msra.mxu0 0
  %2479 = vmatpush.bf16.msra.mxu0 0
  %2480 = vmatpush.bf16.msra.mxu0 0
  %2481 = vmatpush.bf16.msra.mxu0 0
  %2482 = vmatpush.bf16.msra.mxu0 0
  %2483 = vmatpush.bf16.msra.mxu0 0
  %2484 = vmatpush.bf16.msra.mxu0 0
  %2485 = vmatpush.bf16.msra.mxu0 %v2410
  %2486 = vmatmul.bf16.gmra.mxu0 %v2437
  %v2487 = vpop.f32.mrf.mxu0
  %v2488 = vadd.f32 %v2475, %v2487
  %v2489 = vpop.f32.mrf.mxu0
  %2490 = vdwg.mxu0
  %2491 = vst [vmem:[%s9] sm:$0xff] %v2488
  // Predicated region
  $region38: #{_forward_fused.1} parent=0 // pred_check
    _
  $region39: #{_forward_fused.1} parent=0 // pred_check_branch
    %2493 = sbr.rel (0) target = $region41
  $region40: #{_forward_fused.1} parent=0 // pred_region
    _
  $region41: #{_forward_fused.1} parent=0 // pred_fallthru
    _
  // Predicated region
  $region42: #{_forward_fused.1} parent=0 // pred_check
    _
  $region43: #{_forward_fused.1} parent=0 // pred_check_branch
    %2495 = sbr.rel (0) target = $region45
  $region44: #{_forward_fused.1} parent=0 // pred_region
    _
  $region45: #{_forward_fused.1} parent=0 // pred_fallthru
    _

</llo_original>
